<compile_context>
chip_gen: v7x
topology: tpu7x:2x2x1
jax: 0.10.0
libtpu: 0.0.40
codegen_flags: <defaults>
</compile_context>

<pallas_src>
import functools

import jax
import jax.numpy as jnp
from jax.experimental import pallas as pl
from jax.experimental.pallas import tpu as pltpu


# -----------------------------------------------------------------------------
# Pallas kernel: one (batch element, layer) step of the encoder stack.
# The output block is VMEM-resident across the (innermost, "arbitrary") layer
# axis and doubles as the carried activation.
# -----------------------------------------------------------------------------
def encoder_stack_kernel(
    x_ref,        # (L, D)             input embeddings for this batch element
    wqkv_ref,     # (1, D, H*(2dk+dv)) fused Q|K|V projection
    wo_ref,       # (1, H*dv, D)
    w1_ref,       # (1, D, d_inner)
    w2_ref,       # (1, d_inner, D)
    small_ref,    # (1, 6, P)  rows: ln1_g, ln1_b, b1, b2, ln2_g, ln2_b
    out_ref,      # (L, D) f32 output block -- resident accumulator across layers
    *, n_head, d_k, d_v, d_inner, approx_recip,
):
    layer = pl.program_id(1)

    @pl.when(layer == 0)
    def _():
        out_ref[...] = x_ref[...].astype(jnp.float32)

    x = out_ref[...]                                     # (L, D) f32 carried act
    L, D = x.shape
    H = n_head

    def mm(a, w):
        # MXU matmul, f32 accumulation; LHS cast to the weight dtype so bf16
        # weights use the bf16 MXU path.
        return jnp.dot(a.astype(w.dtype), w, preferred_element_type=jnp.float32)

    # ---- fused small params (single DMA'd block) ----------------------------
    small = small_ref[0]                                 # (6, P) f32
    ln1_g = small[0:1, :D]
    ln1_b = small[1:2, :D]
    b1    = small[2:3, :d_inner]
    b2    = small[3:4, :D]
    ln2_g = small[4:5, :D]
    ln2_b = small[5:6, :D]

    # ---- fused QKV projection: one wide matmul ------------------------------
    qkv = mm(x, wqkv_ref[0])                             # (L, 2*H*dk + H*dv)
    q = qkv[:, : H * d_k] * (1.0 / (float(d_k) ** 0.5))  # scale applied to Q
    k = qkv[:, H * d_k: 2 * H * d_k]
    v = qkv[:, 2 * H * d_k:]

    # ---- multi-head self-attention -------------------------------------------
    # H is genuinely tiny -> static unroll is fine; contexts are concatenated
    # and folded through Wo with ONE matmul (review item #2).
    # TODO(synk): head-major / block-diagonal-masked scores for realistic L.
    ctxs = []
    for h in range(H):
        qh = q[:, h * d_k:(h + 1) * d_k]                 # (L, dk)
        kh = k[:, h * d_k:(h + 1) * d_k]                 # (L, dk)
        vh = v[:, h * d_v:(h + 1) * d_v]                 # (L, dv)
        s = jnp.dot(qh, kh.T, preferred_element_type=jnp.float32)   # (L, L)
        s = s - jnp.max(s, axis=-1, keepdims=True)
        p = jnp.exp(s)
        den = jnp.sum(p, axis=-1, keepdims=True)
        attn = p * pl.reciprocal(den, approx=True) if approx_recip else p / den
        ctxs.append(jnp.dot(attn, vh, preferred_element_type=jnp.float32))
    ctx = ctxs[0] if H == 1 else jnp.concatenate(ctxs, axis=-1)      # (L, H*dv)

    o = mm(ctx, wo_ref[0])                               # (L, D): single Wo push

    # ---- residual + LayerNorm 1 (eps=1e-6, affine) ---------------------------
    h1 = o + x
    mu = jnp.mean(h1, axis=-1, keepdims=True)
    var = jnp.mean((h1 - mu) ** 2, axis=-1, keepdims=True)
    h1 = (h1 - mu) * jax.lax.rsqrt(var + 1e-6) * ln1_g + ln1_b

    # ---- position-wise feed-forward -------------------------------------------
    # TODO(synk): tile w1/w2 over d_inner with an extra "arbitrary" grid axis at
    #             realistic d_model/d_inner (v7x has only 64 MiB VMEM).
    f = jnp.maximum(mm(h1, w1_ref[0]) + b1, 0.0)
    f = mm(f, w2_ref[0]) + b2
    g = f + h1

    # ---- residual + LayerNorm 2 ------------------------------------------------
    mu2 = jnp.mean(g, axis=-1, keepdims=True)
    var2 = jnp.mean((g - mu2) ** 2, axis=-1, keepdims=True)
    g = (g - mu2) * jax.lax.rsqrt(var2 + 1e-6) * ln2_g + ln2_b

    out_ref[...] = g                                     # one store per layer


# -----------------------------------------------------------------------------
# Parameter prep: stack per-layer params, fuse Q/K/V, fuse the six small params
# into one padded array, optionally cast the big matmul weights to bf16.
# -----------------------------------------------------------------------------
def _pad_row(v, width):
    v = jnp.asarray(v, jnp.float32).reshape(-1)
    return jnp.pad(v, (0, width - v.shape[0]))


def prepare_stacked_params(layer_params, *, weight_dtype=jnp.float32):
    d_model = layer_params[0]["wq"].shape[0]
    d_inner = layer_params[0]["w1"].shape[1]
    P = max(d_model, d_inner)

    wqkv = jnp.stack(
        [jnp.concatenate([p["wq"], p["wk"], p["wv"]], axis=1) for p in layer_params],
        axis=0)
    small = jnp.stack(
        [jnp.stack([_pad_row(p["ln1_g"], P), _pad_row(p["ln1_b"], P),
                    _pad_row(p["b1"], P),   _pad_row(p["b2"], P),
                    _pad_row(p["ln2_g"], P), _pad_row(p["ln2_b"], P)], axis=0)
         for p in layer_params], axis=0)                 # (n_layers, 6, P) f32

    return {
        "wqkv": wqkv.astype(weight_dtype),
        "wo": jnp.stack([p["wo"] for p in layer_params], 0).astype(weight_dtype),
        "w1": jnp.stack([p["w1"] for p in layer_params], 0).astype(weight_dtype),
        "w2": jnp.stack([p["w2"] for p in layer_params], 0).astype(weight_dtype),
        "small": small,                                  # LN / biases stay f32
    }


# -----------------------------------------------------------------------------
# Wrapper: ONE pallas_call for the entire stack. grid = (batch, n_layers).
# -----------------------------------------------------------------------------
def _vmem_limit_bytes():
    cap = 128 * 1024 * 1024
    try:
        cap = int(getattr(pltpu.get_tpu_info(), "vmem_capacity_bytes", cap))
    except Exception:
        pass
    # ~25% headroom for compiler scratch; never below a sane floor.
    return max(min((cap * 3) // 4, 100 * 1024 * 1024), 32 * 1024 * 1024)


def encoder_emo_pallas(x, stacked, *, n_head, d_k, d_v,
                       approx_reciprocal=True, weight_buffer_count=None):
    """Encoder_emo.forward(src_seq_emb) -> (enc_output,)  (eval mode)."""
    B, L, D = x.shape
    n_layers = stacked["wqkv"].shape[0]
    d_inner = stacked["w1"].shape[-1]
    x2d = x.reshape(B * L, D)

    def wspec(arr, buffers=None):
        nd = arr.ndim
        shape = (1,) + arr.shape[1:]

        def imap(b, l):
            return (l,) + (0,) * (nd - 1)

        if buffers is not None and buffers != 2:
            try:   # deeper weight pipelining when per-layer compute << weight DMA
                return pl.BlockSpec(shape, imap, pipeline_mode=pl.Buffered(buffers))
            except TypeError:
                pass
        return pl.BlockSpec(shape, imap)

    # Activation / output block: index invariant along the layer axis => stays
    # VMEM-resident across layers and serves as the carried activation.
    act_spec = pl.BlockSpec((L, D), lambda b, l: (b, 0))

    kernel = functools.partial(
        encoder_stack_kernel, n_head=n_head, d_k=d_k, d_v=d_v,
        d_inner=d_inner, approx_recip=approx_reciprocal)

    # Advisory cost estimate for XLA's scheduler around the custom call.
    qkv_w = n_head * (2 * d_k + d_v)
    per_bl_flops = (2 * L * D * qkv_w
                    + n_head * 2 * L * L * (d_k + d_v)
                    + 2 * L * (n_head * d_v) * D
                    + 4 * L * D * d_inner)
    flops = int(B * n_layers * per_bl_flops)
    transcendentals = int(B * n_layers * (n_head * L * L + 2 * L))
    weight_bytes = sum(int(stacked[k].size) * stacked[k].dtype.itemsize
                       for k in ("wqkv", "wo", "w1", "w2", "small"))
    bytes_accessed = int(x2d.size * x2d.dtype.itemsize
                         + B * L * D * 4
                         + B * weight_bytes)   # weights re-fetched per batch block

    out2d = pl.pallas_call(
        kernel,
        out_shape=jax.ShapeDtypeStruct((B * L, D), jnp.float32),
        grid_spec=pltpu.PrefetchScalarGridSpec(
            num_scalar_prefetch=0,
            # batch "parallel" (uses both TCs on v7x); layer axis innermost +
            # "arbitrary" so the activation block is resident across layers.
            grid=(B, n_layers),
            in_specs=[act_spec,
                      wspec(stacked["wqkv"], weight_buffer_count),
                      wspec(stacked["wo"]),
                      wspec(stacked["w1"], weight_buffer_count),
                      wspec(stacked["w2"], weight_buffer_count),
                      wspec(stacked["small"])],
            out_specs=act_spec,
        ),
        compiler_params=pltpu.CompilerParams(
            dimension_semantics=("parallel", "arbitrary"),
            vmem_limit_bytes=_vmem_limit_bytes(),
        ),
        cost_estimate=pl.CostEstimate(flops=flops,
                                      transcendentals=transcendentals,
                                      bytes_accessed=bytes_accessed),
    )(x2d, stacked["wqkv"], stacked["wo"], stacked["w1"], stacked["w2"],
      stacked["small"])

    return (out2d.reshape(B, L, D).astype(x.dtype),)


# -----------------------------------------------------------------------------
# Pure-JAX reference (same math as the PyTorch module, eval mode).
# -----------------------------------------------------------------------------
def encoder_layer_ref(x, p, *, n_head, d_k, d_v):
    B, L, D = x.shape
    q = x @ p["wq"]
    k = x @ p["wk"]
    v = x @ p["wv"]
    q = q.reshape(B, L, n_head, d_k).transpose(0, 2, 1, 3)
    k = k.reshape(B, L, n_head, d_k).transpose(0, 2, 1, 3)
    v = v.reshape(B, L, n_head, d_v).transpose(0, 2, 1, 3)
    s = jnp.einsum("bhqd,bhkd->bhqk", q, k) / (d_k ** 0.5)
    attn = jax.nn.softmax(s, axis=-1)
    ctx = jnp.einsum("bhqk,bhkd->bhqd", attn, v)
    ctx = ctx.transpose(0, 2, 1, 3).reshape(B, L, n_head * d_v)
    h = ctx @ p["wo"] + x
    mu = h.mean(-1, keepdims=True)
    var = ((h - mu) ** 2).mean(-1, keepdims=True)
    h = (h - mu) / jnp.sqrt(var + 1e-6) * p["ln1_g"][0] + p["ln1_b"][0]
    f = jnp.maximum(h @ p["w1"] + p["b1"][0], 0.0) @ p["w2"] + p["b2"][0]
    g = f + h
    mu2 = g.mean(-1, keepdims=True)
    var2 = ((g - mu2) ** 2).mean(-1, keepdims=True)
    return (g - mu2) / jnp.sqrt(var2 + 1e-6) * p["ln2_g"][0] + p["ln2_b"][0]


def encoder_emo_ref(x, layer_params, *, n_head, d_k, d_v):
    out = x
    for p in layer_params:
        out = encoder_layer_ref(out, p, n_head=n_head, d_k=d_k, d_v=d_v)
    return out


# -----------------------------------------------------------------------------
# Deterministic parameter init (synthetic; shapes follow the module __init__).
# Linear weights are stored (in_features, out_features) so y = x @ W.
# -----------------------------------------------------------------------------
def init_layer_params(key, d_model, d_inner, n_head, d_k, d_v):
    ks = jax.random.split(key, 8)
    scale = 0.1
    return {
        "wq": scale * jax.random.normal(ks[0], (d_model, n_head * d_k), jnp.float32),
        "wk": scale * jax.random.normal(ks[1], (d_model, n_head * d_k), jnp.float32),
        "wv": scale * jax.random.normal(ks[2], (d_model, n_head * d_v), jnp.float32),
        "wo": scale * jax.random.normal(ks[3], (n_head * d_v, d_model), jnp.float32),
        "ln1_g": jnp.ones((1, d_model), jnp.float32),
        "ln1_b": jnp.zeros((1, d_model), jnp.float32),
        "w1": scale * jax.random.normal(ks[4], (d_model, d_inner), jnp.float32),
        "b1": scale * jax.random.normal(ks[5], (1, d_inner), jnp.float32),
        "w2": scale * jax.random.normal(ks[6], (d_inner, d_model), jnp.float32),
        "b2": scale * jax.random.normal(ks[7], (1, d_model), jnp.float32),
        "ln2_g": jnp.ones((1, d_model), jnp.float32),
        "ln2_b": jnp.zeros((1, d_model), jnp.float32),
    }


if __name__ == "__main__":
    # Small shapes consistent with the module's forward.
    B, L = 2, 8
    n_layers, n_head, d_k, d_v, d_model, d_inner = 2, 4, 8, 8, 32, 64

    key = jax.random.PRNGKey(0)
    kx, kp = jax.random.split(key)
    x = jax.random.normal(kx, (B, L, d_model), jnp.float32)

    layer_keys = jax.random.split(kp, n_layers)
    layer_params = [
        init_layer_params(layer_keys[i], d_model, d_inner, n_head, d_k, d_v)
        for i in range(n_layers)
    ]

    # ---- f32 weights: faithful to the PyTorch module numerics ---------------
    stacked_f32 = prepare_stacked_params(layer_params, weight_dtype=jnp.float32)
    (enc_out,) = encoder_emo_pallas(x, stacked_f32,
                                    n_head=n_head, d_k=d_k, d_v=d_v)
    enc_out = jax.block_until_ready(enc_out)
    ref_out = encoder_emo_ref(x, layer_params, n_head=n_head, d_k=d_k, d_v=d_v)
    assert enc_out.shape == (B, L, d_model)
    assert jnp.allclose(enc_out, ref_out, rtol=2e-3, atol=2e-3), (
        "f32 mismatch, max abs err = %g"
        % float(jnp.max(jnp.abs(enc_out - ref_out))))

    # ---- bf16 weights (half the weight DMA, bf16 MXU); LN/softmax stay f32 --
    stacked_bf16 = prepare_stacked_params(layer_params, weight_dtype=jnp.bfloat16)
    (enc_out_bf16,) = encoder_emo_pallas(x, stacked_bf16,
                                         n_head=n_head, d_k=d_k, d_v=d_v)
    enc_out_bf16 = jax.block_until_ready(enc_out_bf16)
    layer_params_bf16 = [
        {k: (v.astype(jnp.bfloat16).astype(jnp.float32)
             if k in ("wq", "wk", "wv", "wo", "w1", "w2") else v)
         for k, v in p.items()}
        for p in layer_params
    ]
    ref_bf16 = encoder_emo_ref(x, layer_params_bf16,
                               n_head=n_head, d_k=d_k, d_v=d_v)
    assert jnp.allclose(enc_out_bf16, ref_bf16, rtol=5e-2, atol=5e-2)

    print("KERNEL_OK")
</pallas_src>

<mosaic_0001>
module attributes {stable_mosaic.version = 11 : i64} {
  func.func @encoder_stack_kernel(%arg0: i32, %arg1: i32, %arg2: memref<8x32xf32, #tpu.memory_space<vmem>>, %arg3: memref<1x32x96xf32, #tpu.memory_space<vmem>>, %arg4: memref<1x32x32xf32, #tpu.memory_space<vmem>>, %arg5: memref<1x32x64xf32, #tpu.memory_space<vmem>>, %arg6: memref<1x64x32xf32, #tpu.memory_space<vmem>>, %arg7: memref<1x6x64xf32, #tpu.memory_space<vmem>>, %arg8: memref<8x32xf32, #tpu.memory_space<vmem>>) attributes {dimension_semantics = [#tpu.dimension_semantics<parallel>, #tpu.dimension_semantics<arbitrary>], iteration_bounds = array<i64: 2, 2>, scalar_prefetch = 0 : i64, scratch_operands = 0 : i64, tpu.core_type = #tpu.core_type<tc>, window_params = [{transform_indices = @transform_0, window_bounds = array<i64: 8, 32>}, {transform_indices = @transform_1, window_bounds = array<i64: 1, 32, 96>}, {transform_indices = @transform_2, window_bounds = array<i64: 1, 32, 32>}, {transform_indices = @transform_3, window_bounds = array<i64: 1, 32, 64>}, {transform_indices = @transform_4, window_bounds = array<i64: 1, 64, 32>}, {transform_indices = @transform_5, window_bounds = array<i64: 1, 6, 64>}, {transform_indices = @transform_6, window_bounds = array<i64: 8, 32>}]} {
    %c0_i32 = arith.constant 0 : i32
    %0 = arith.cmpi eq, %arg1, %c0_i32 : i32
    %1 = arith.extui %0 : i1 to i32
    %c0_i32_0 = arith.constant 0 : i32
    %2 = arith.cmpi ne, %1, %c0_i32_0 : i32
    scf.if %2 {
      %c0_50 = arith.constant 0 : index
      %c0_51 = arith.constant 0 : index
      %147 = vector.load %arg2[%c0_50, %c0_51] : memref<8x32xf32, #tpu.memory_space<vmem>>, vector<8x32xf32>
      %c0_52 = arith.constant 0 : index
      %c0_53 = arith.constant 0 : index
      %148 = vector.load %arg8[%c0_52, %c0_53] : memref<8x32xf32, #tpu.memory_space<vmem>>, vector<8x32xf32>
      tpu.vector_store %arg8[%c0_52, %c0_53], %147 {strides = array<i32>} : memref<8x32xf32, #tpu.memory_space<vmem>>, vector<8x32xf32>,
    } else {
    }
    %c0 = arith.constant 0 : index
    %c0_1 = arith.constant 0 : index
    %3 = vector.load %arg8[%c0, %c0_1] : memref<8x32xf32, #tpu.memory_space<vmem>>, vector<8x32xf32>
    %c0_2 = arith.constant 0 : index
    %c0_3 = arith.constant 0 : index
    %c0_4 = arith.constant 0 : index
    %4 = vector.load %arg7[%c0_2, %c0_3, %c0_4] : memref<1x6x64xf32, #tpu.memory_space<vmem>>, vector<1x6x64xf32>
    %5 = vector.shape_cast %4 : vector<1x6x64xf32> to vector<6x64xf32>
    %6 = vector.extract_strided_slice %5 {offsets = [0, 0], sizes = [1, 32], strides = [1, 1]} : vector<6x64xf32> to vector<1x32xf32>
    %7 = vector.extract_strided_slice %5 {offsets = [1, 0], sizes = [1, 32], strides = [1, 1]} : vector<6x64xf32> to vector<1x32xf32>
    %8 = vector.extract_strided_slice %5 {offsets = [2, 0], sizes = [1, 64], strides = [1, 1]} : vector<6x64xf32> to vector<1x64xf32>
    %9 = vector.extract_strided_slice %5 {offsets = [3, 0], sizes = [1, 32], strides = [1, 1]} : vector<6x64xf32> to vector<1x32xf32>
    %10 = vector.extract_strided_slice %5 {offsets = [4, 0], sizes = [1, 32], strides = [1, 1]} : vector<6x64xf32> to vector<1x32xf32>
    %11 = vector.extract_strided_slice %5 {offsets = [5, 0], sizes = [1, 32], strides = [1, 1]} : vector<6x64xf32> to vector<1x32xf32>
    %c0_5 = arith.constant 0 : index
    %c0_6 = arith.constant 0 : index
    %c0_7 = arith.constant 0 : index
    %12 = vector.load %arg3[%c0_5, %c0_6, %c0_7] : memref<1x32x96xf32, #tpu.memory_space<vmem>>, vector<1x32x96xf32>
    %13 = vector.shape_cast %12 : vector<1x32x96xf32> to vector<32x96xf32>
    %cst = arith.constant dense<0.000000e+00> : vector<8x96xf32>
    %14 = tpu.matmul %3, %13, %cst {dimension_numbers = #tpu.dot_dimension_numbers<[1], [0], [0], [1], [0, 0, 1, 1], [], []>} : vector<8x32xf32>, vector<32x96xf32>, vector<8x96xf32> -> vector<8x96xf32>
    %15 = vector.extract_strided_slice %14 {offsets = [0, 0], sizes = [8, 32], strides = [1, 1]} : vector<8x96xf32> to vector<8x32xf32>
    %cst_8 = arith.constant 0.353553385 : f32
    %16 = vector.broadcast %cst_8 : f32 to vector<8x32xf32>
    %17 = arith.mulf %15, %16 : vector<8x32xf32>
    %18 = vector.extract_strided_slice %14 {offsets = [0, 32], sizes = [8, 32], strides = [1, 1]} : vector<8x96xf32> to vector<8x32xf32>
    %19 = vector.extract_strided_slice %14 {offsets = [0, 64], sizes = [8, 32], strides = [1, 1]} : vector<8x96xf32> to vector<8x32xf32>
    %20 = vector.extract_strided_slice %17 {offsets = [0, 0], sizes = [8, 8], strides = [1, 1]} : vector<8x32xf32> to vector<8x8xf32>
    %21 = vector.extract_strided_slice %18 {offsets = [0, 0], sizes = [8, 8], strides = [1, 1]} : vector<8x32xf32> to vector<8x8xf32>
    %22 = vector.extract_strided_slice %19 {offsets = [0, 0], sizes = [8, 8], strides = [1, 1]} : vector<8x32xf32> to vector<8x8xf32>
    %23 = tpu.transpose %21, [1, 0] : vector<8x8xf32> -> vector<8x8xf32>
    %cst_9 = arith.constant dense<0.000000e+00> : vector<8x8xf32>
    %24 = tpu.matmul %20, %23, %cst_9 {dimension_numbers = #tpu.dot_dimension_numbers<[1], [0], [0], [1], [0, 0, 1, 1], [], []>} : vector<8x8xf32>, vector<8x8xf32>, vector<8x8xf32> -> vector<8x8xf32>
    %cst_10 = arith.constant dense<0xFF800000> : vector<8xf32>
    %25 = vector.multi_reduction <maximumf>, %24, %cst_10 [1] : vector<8x8xf32> to vector<8xf32>
    %26 = vector.shape_cast %25 : vector<8xf32> to vector<8x1xf32>
    %27 = vector.broadcast %26 : vector<8x1xf32> to vector<8x8xf32>
    %28 = arith.subf %24, %27 : vector<8x8xf32>
    %29 = math.exp %28 : vector<8x8xf32>
    %cst_11 = arith.constant dense<0.000000e+00> : vector<8xf32>
    %30 = vector.multi_reduction <add>, %29, %cst_11 [1] : vector<8x8xf32> to vector<8xf32>
    %31 = vector.shape_cast %30 : vector<8xf32> to vector<8x1xf32>
    %32 = tpu.reciprocal %31 {approx = true} : vector<8x1xf32> -> vector<8x1xf32>
    %33 = vector.broadcast %32 : vector<8x1xf32> to vector<8x8xf32>
    %34 = arith.mulf %29, %33 : vector<8x8xf32>
    %cst_12 = arith.constant dense<0.000000e+00> : vector<8x8xf32>
    %35 = tpu.matmul %34, %22, %cst_12 {dimension_numbers = #tpu.dot_dimension_numbers<[1], [0], [0], [1], [0, 0, 1, 1], [], []>} : vector<8x8xf32>, vector<8x8xf32>, vector<8x8xf32> -> vector<8x8xf32>
    %36 = vector.extract_strided_slice %17 {offsets = [0, 8], sizes = [8, 8], strides = [1, 1]} : vector<8x32xf32> to vector<8x8xf32>
    %37 = vector.extract_strided_slice %18 {offsets = [0, 8], sizes = [8, 8], strides = [1, 1]} : vector<8x32xf32> to vector<8x8xf32>
    %38 = vector.extract_strided_slice %19 {offsets = [0, 8], sizes = [8, 8], strides = [1, 1]} : vector<8x32xf32> to vector<8x8xf32>
    %39 = tpu.transpose %37, [1, 0] : vector<8x8xf32> -> vector<8x8xf32>
    %cst_13 = arith.constant dense<0.000000e+00> : vector<8x8xf32>
    %40 = tpu.matmul %36, %39, %cst_13 {dimension_numbers = #tpu.dot_dimension_numbers<[1], [0], [0], [1], [0, 0, 1, 1], [], []>} : vector<8x8xf32>, vector<8x8xf32>, vector<8x8xf32> -> vector<8x8xf32>
    %cst_14 = arith.constant dense<0xFF800000> : vector<8xf32>
    %41 = vector.multi_reduction <maximumf>, %40, %cst_14 [1] : vector<8x8xf32> to vector<8xf32>
    %42 = vector.shape_cast %41 : vector<8xf32> to vector<8x1xf32>
    %43 = vector.broadcast %42 : vector<8x1xf32> to vector<8x8xf32>
    %44 = arith.subf %40, %43 : vector<8x8xf32>
    %45 = math.exp %44 : vector<8x8xf32>
    %cst_15 = arith.constant dense<0.000000e+00> : vector<8xf32>
    %46 = vector.multi_reduction <add>, %45, %cst_15 [1] : vector<8x8xf32> to vector<8xf32>
    %47 = vector.shape_cast %46 : vector<8xf32> to vector<8x1xf32>
    %48 = tpu.reciprocal %47 {approx = true} : vector<8x1xf32> -> vector<8x1xf32>
    %49 = vector.broadcast %48 : vector<8x1xf32> to vector<8x8xf32>
    %50 = arith.mulf %45, %49 : vector<8x8xf32>
    %cst_16 = arith.constant dense<0.000000e+00> : vector<8x8xf32>
    %51 = tpu.matmul %50, %38, %cst_16 {dimension_numbers = #tpu.dot_dimension_numbers<[1], [0], [0], [1], [0, 0, 1, 1], [], []>} : vector<8x8xf32>, vector<8x8xf32>, vector<8x8xf32> -> vector<8x8xf32>
    %52 = vector.extract_strided_slice %17 {offsets = [0, 16], sizes = [8, 8], strides = [1, 1]} : vector<8x32xf32> to vector<8x8xf32>
    %53 = vector.extract_strided_slice %18 {offsets = [0, 16], sizes = [8, 8], strides = [1, 1]} : vector<8x32xf32> to vector<8x8xf32>
    %54 = vector.extract_strided_slice %19 {offsets = [0, 16], sizes = [8, 8], strides = [1, 1]} : vector<8x32xf32> to vector<8x8xf32>
    %55 = tpu.transpose %53, [1, 0] : vector<8x8xf32> -> vector<8x8xf32>
    %cst_17 = arith.constant dense<0.000000e+00> : vector<8x8xf32>
    %56 = tpu.matmul %52, %55, %cst_17 {dimension_numbers = #tpu.dot_dimension_numbers<[1], [0], [0], [1], [0, 0, 1, 1], [], []>} : vector<8x8xf32>, vector<8x8xf32>, vector<8x8xf32> -> vector<8x8xf32>
    %cst_18 = arith.constant dense<0xFF800000> : vector<8xf32>
    %57 = vector.multi_reduction <maximumf>, %56, %cst_18 [1] : vector<8x8xf32> to vector<8xf32>
    %58 = vector.shape_cast %57 : vector<8xf32> to vector<8x1xf32>
    %59 = vector.broadcast %58 : vector<8x1xf32> to vector<8x8xf32>
    %60 = arith.subf %56, %59 : vector<8x8xf32>
    %61 = math.exp %60 : vector<8x8xf32>
    %cst_19 = arith.constant dense<0.000000e+00> : vector<8xf32>
    %62 = vector.multi_reduction <add>, %61, %cst_19 [1] : vector<8x8xf32> to vector<8xf32>
    %63 = vector.shape_cast %62 : vector<8xf32> to vector<8x1xf32>
    %64 = tpu.reciprocal %63 {approx = true} : vector<8x1xf32> -> vector<8x1xf32>
    %65 = vector.broadcast %64 : vector<8x1xf32> to vector<8x8xf32>
    %66 = arith.mulf %61, %65 : vector<8x8xf32>
    %cst_20 = arith.constant dense<0.000000e+00> : vector<8x8xf32>
    %67 = tpu.matmul %66, %54, %cst_20 {dimension_numbers = #tpu.dot_dimension_numbers<[1], [0], [0], [1], [0, 0, 1, 1], [], []>} : vector<8x8xf32>, vector<8x8xf32>, vector<8x8xf32> -> vector<8x8xf32>
    %68 = vector.extract_strided_slice %17 {offsets = [0, 24], sizes = [8, 8], strides = [1, 1]} : vector<8x32xf32> to vector<8x8xf32>
    %69 = vector.extract_strided_slice %18 {offsets = [0, 24], sizes = [8, 8], strides = [1, 1]} : vector<8x32xf32> to vector<8x8xf32>
    %70 = vector.extract_strided_slice %19 {offsets = [0, 24], sizes = [8, 8], strides = [1, 1]} : vector<8x32xf32> to vector<8x8xf32>
    %71 = tpu.transpose %69, [1, 0] : vector<8x8xf32> -> vector<8x8xf32>
    %cst_21 = arith.constant dense<0.000000e+00> : vector<8x8xf32>
    %72 = tpu.matmul %68, %71, %cst_21 {dimension_numbers = #tpu.dot_dimension_numbers<[1], [0], [0], [1], [0, 0, 1, 1], [], []>} : vector<8x8xf32>, vector<8x8xf32>, vector<8x8xf32> -> vector<8x8xf32>
    %cst_22 = arith.constant dense<0xFF800000> : vector<8xf32>
    %73 = vector.multi_reduction <maximumf>, %72, %cst_22 [1] : vector<8x8xf32> to vector<8xf32>
    %74 = vector.shape_cast %73 : vector<8xf32> to vector<8x1xf32>
    %75 = vector.broadcast %74 : vector<8x1xf32> to vector<8x8xf32>
    %76 = arith.subf %72, %75 : vector<8x8xf32>
    %77 = math.exp %76 : vector<8x8xf32>
    %cst_23 = arith.constant dense<0.000000e+00> : vector<8xf32>
    %78 = vector.multi_reduction <add>, %77, %cst_23 [1] : vector<8x8xf32> to vector<8xf32>
    %79 = vector.shape_cast %78 : vector<8xf32> to vector<8x1xf32>
    %80 = tpu.reciprocal %79 {approx = true} : vector<8x1xf32> -> vector<8x1xf32>
    %81 = vector.broadcast %80 : vector<8x1xf32> to vector<8x8xf32>
    %82 = arith.mulf %77, %81 : vector<8x8xf32>
    %cst_24 = arith.constant dense<0.000000e+00> : vector<8x8xf32>
    %83 = tpu.matmul %82, %70, %cst_24 {dimension_numbers = #tpu.dot_dimension_numbers<[1], [0], [0], [1], [0, 0, 1, 1], [], []>} : vector<8x8xf32>, vector<8x8xf32>, vector<8x8xf32> -> vector<8x8xf32>
    %84 = tpu.concatenate %35, %51, %67, %83 in 1 : vector<8x8xf32>, vector<8x8xf32>, vector<8x8xf32>, vector<8x8xf32> -> vector<8x32xf32>
    %c0_25 = arith.constant 0 : index
    %c0_26 = arith.constant 0 : index
    %c0_27 = arith.constant 0 : index
    %85 = vector.load %arg4[%c0_25, %c0_26, %c0_27] : memref<1x32x32xf32, #tpu.memory_space<vmem>>, vector<1x32x32xf32>
    %86 = vector.shape_cast %85 : vector<1x32x32xf32> to vector<32x32xf32>
    %cst_28 = arith.constant dense<0.000000e+00> : vector<8x32xf32>
    %87 = tpu.matmul %84, %86, %cst_28 {dimension_numbers = #tpu.dot_dimension_numbers<[1], [0], [0], [1], [0, 0, 1, 1], [], []>} : vector<8x32xf32>, vector<32x32xf32>, vector<8x32xf32> -> vector<8x32xf32>
    %88 = arith.addf %87, %3 : vector<8x32xf32>
    %cst_29 = arith.constant dense<0.000000e+00> : vector<8xf32>
    %89 = vector.multi_reduction <add>, %88, %cst_29 [1] : vector<8x32xf32> to vector<8xf32>
    %90 = vector.shape_cast %89 : vector<8xf32> to vector<8x1xf32>
    %cst_30 = arith.constant 3.200000e+01 : f32
    %91 = vector.broadcast %cst_30 : f32 to vector<8x1xf32>
    %92 = arith.divf %90, %91 : vector<8x1xf32>
    %93 = vector.broadcast %92 : vector<8x1xf32> to vector<8x32xf32>
    %94 = arith.subf %88, %93 : vector<8x32xf32>
    %95 = arith.mulf %94, %94 : vector<8x32xf32>
    %cst_31 = arith.constant dense<0.000000e+00> : vector<8xf32>
    %96 = vector.multi_reduction <add>, %95, %cst_31 [1] : vector<8x32xf32> to vector<8xf32>
    %97 = vector.shape_cast %96 : vector<8xf32> to vector<8x1xf32>
    %cst_32 = arith.constant 3.200000e+01 : f32
    %98 = vector.broadcast %cst_32 : f32 to vector<8x1xf32>
    %99 = arith.divf %97, %98 : vector<8x1xf32>
    %100 = vector.broadcast %92 : vector<8x1xf32> to vector<8x32xf32>
    %101 = arith.subf %88, %100 : vector<8x32xf32>
    %cst_33 = arith.constant 9.99999997E-7 : f32
    %102 = vector.broadcast %cst_33 : f32 to vector<8x1xf32>
    %103 = arith.addf %99, %102 : vector<8x1xf32>
    %104 = math.rsqrt %103 : vector<8x1xf32>
    %105 = vector.broadcast %104 : vector<8x1xf32> to vector<8x32xf32>
    %106 = arith.mulf %101, %105 : vector<8x32xf32>
    %107 = vector.broadcast %6 : vector<1x32xf32> to vector<8x32xf32>
    %108 = arith.mulf %106, %107 : vector<8x32xf32>
    %109 = vector.broadcast %7 : vector<1x32xf32> to vector<8x32xf32>
    %110 = arith.addf %108, %109 : vector<8x32xf32>
    %c0_34 = arith.constant 0 : index
    %c0_35 = arith.constant 0 : index
    %c0_36 = arith.constant 0 : index
    %111 = vector.load %arg5[%c0_34, %c0_35, %c0_36] : memref<1x32x64xf32, #tpu.memory_space<vmem>>, vector<1x32x64xf32>
    %112 = vector.shape_cast %111 : vector<1x32x64xf32> to vector<32x64xf32>
    %cst_37 = arith.constant dense<0.000000e+00> : vector<8x64xf32>
    %113 = tpu.matmul %110, %112, %cst_37 {dimension_numbers = #tpu.dot_dimension_numbers<[1], [0], [0], [1], [0, 0, 1, 1], [], []>} : vector<8x32xf32>, vector<32x64xf32>, vector<8x64xf32> -> vector<8x64xf32>
    %114 = vector.broadcast %8 : vector<1x64xf32> to vector<8x64xf32>
    %115 = arith.addf %113, %114 : vector<8x64xf32>
    %cst_38 = arith.constant 0.000000e+00 : f32
    %116 = vector.broadcast %cst_38 : f32 to vector<8x64xf32>
    %117 = arith.maximumf %115, %116 : vector<8x64xf32>
    %c0_39 = arith.constant 0 : index
    %c0_40 = arith.constant 0 : index
    %c0_41 = arith.constant 0 : index
    %118 = vector.load %arg6[%c0_39, %c0_40, %c0_41] : memref<1x64x32xf32, #tpu.memory_space<vmem>>, vector<1x64x32xf32>
    %119 = vector.shape_cast %118 : vector<1x64x32xf32> to vector<64x32xf32>
    %cst_42 = arith.constant dense<0.000000e+00> : vector<8x32xf32>
    %120 = tpu.matmul %117, %119, %cst_42 {dimension_numbers = #tpu.dot_dimension_numbers<[1], [0], [0], [1], [0, 0, 1, 1], [], []>} : vector<8x64xf32>, vector<64x32xf32>, vector<8x32xf32> -> vector<8x32xf32>
    %121 = vector.broadcast %9 : vector<1x32xf32> to vector<8x32xf32>
    %122 = arith.addf %120, %121 : vector<8x32xf32>
    %123 = arith.addf %122, %110 : vector<8x32xf32>
    %cst_43 = arith.constant dense<0.000000e+00> : vector<8xf32>
    %124 = vector.multi_reduction <add>, %123, %cst_43 [1] : vector<8x32xf32> to vector<8xf32>
    %125 = vector.shape_cast %124 : vector<8xf32> to vector<8x1xf32>
    %cst_44 = arith.constant 3.200000e+01 : f32
    %126 = vector.broadcast %cst_44 : f32 to vector<8x1xf32>
    %127 = arith.divf %125, %126 : vector<8x1xf32>
    %128 = vector.broadcast %127 : vector<8x1xf32> to vector<8x32xf32>
    %129 = arith.subf %123, %128 : vector<8x32xf32>
    %130 = arith.mulf %129, %129 : vector<8x32xf32>
    %cst_45 = arith.constant dense<0.000000e+00> : vector<8xf32>
    %131 = vector.multi_reduction <add>, %130, %cst_45 [1] : vector<8x32xf32> to vector<8xf32>
    %132 = vector.shape_cast %131 : vector<8xf32> to vector<8x1xf32>
    %cst_46 = arith.constant 3.200000e+01 : f32
    %133 = vector.broadcast %cst_46 : f32 to vector<8x1xf32>
    %134 = arith.divf %132, %133 : vector<8x1xf32>
    %135 = vector.broadcast %127 : vector<8x1xf32> to vector<8x32xf32>
    %136 = arith.subf %123, %135 : vector<8x32xf32>
    %cst_47 = arith.constant 9.99999997E-7 : f32
    %137 = vector.broadcast %cst_47 : f32 to vector<8x1xf32>
    %138 = arith.addf %134, %137 : vector<8x1xf32>
    %139 = math.rsqrt %138 : vector<8x1xf32>
    %140 = vector.broadcast %139 : vector<8x1xf32> to vector<8x32xf32>
    %141 = arith.mulf %136, %140 : vector<8x32xf32>
    %142 = vector.broadcast %10 : vector<1x32xf32> to vector<8x32xf32>
    %143 = arith.mulf %141, %142 : vector<8x32xf32>
    %144 = vector.broadcast %11 : vector<1x32xf32> to vector<8x32xf32>
    %145 = arith.addf %143, %144 : vector<8x32xf32>
    %c0_48 = arith.constant 0 : index
    %c0_49 = arith.constant 0 : index
    %146 = vector.load %arg8[%c0_48, %c0_49] : memref<8x32xf32, #tpu.memory_space<vmem>>, vector<8x32xf32>
    tpu.vector_store %arg8[%c0_48, %c0_49], %145 {strides = array<i32>} : memref<8x32xf32, #tpu.memory_space<vmem>>, vector<8x32xf32>,
    return
  }
  func.func @transform_0(%arg0: i32, %arg1: i32) -> (i32, i32) {
    %c0_i32 = arith.constant 0 : i32
    %c0_i32_0 = arith.constant 0 : i32
    return %arg0, %c0_i32 : i32, i32
  }
  func.func @transform_1(%arg0: i32, %arg1: i32) -> (i32, i32, i32) {
    %c0_i32 = arith.constant 0 : i32
    %c0_i32_0 = arith.constant 0 : i32
    %c0_i32_1 = arith.constant 0 : i32
    return %arg1, %c0_i32, %c0_i32_0 : i32, i32, i32
  }
  func.func @transform_2(%arg0: i32, %arg1: i32) -> (i32, i32, i32) {
    %c0_i32 = arith.constant 0 : i32
    %c0_i32_0 = arith.constant 0 : i32
    %c0_i32_1 = arith.constant 0 : i32
    return %arg1, %c0_i32, %c0_i32_0 : i32, i32, i32
  }
  func.func @transform_3(%arg0: i32, %arg1: i32) -> (i32, i32, i32) {
    %c0_i32 = arith.constant 0 : i32
    %c0_i32_0 = arith.constant 0 : i32
    %c0_i32_1 = arith.constant 0 : i32
    return %arg1, %c0_i32, %c0_i32_0 : i32, i32, i32
  }
  func.func @transform_4(%arg0: i32, %arg1: i32) -> (i32, i32, i32) {
    %c0_i32 = arith.constant 0 : i32
    %c0_i32_0 = arith.constant 0 : i32
    %c0_i32_1 = arith.constant 0 : i32
    return %arg1, %c0_i32, %c0_i32_0 : i32, i32, i32
  }
  func.func @transform_5(%arg0: i32, %arg1: i32) -> (i32, i32, i32) {
    %c0_i32 = arith.constant 0 : i32
    %c0_i32_0 = arith.constant 0 : i32
    %c0_i32_1 = arith.constant 0 : i32
    return %arg1, %c0_i32, %c0_i32_0 : i32, i32, i32
  }
  func.func @transform_6(%arg0: i32, %arg1: i32) -> (i32, i32) {
    %c0_i32 = arith.constant 0 : i32
    %c0_i32_0 = arith.constant 0 : i32
    return %arg0, %c0_i32 : i32, i32
  }
}

</mosaic_0001>

<llo_original>
// kernel: tpu_custom_call.1
$region0: #{tpu_custom_call.1}
  #allocation0 [shape = 'u32[]', space=smem, size = 0x4, offset = 0x4, fixed_abs, tag = 'smem constant byte address 0x4 - core index']
  #allocation1 [shape = 'u32[144,128]{1,0:T(1,128)}', space=vmem, size = 0x12000, scoped, tag = 'internal scratch']
  %s0 = inlined_call_operand.hbm [shape: f32[16,32], index: 0, kind: input, shape index: {}]
  %s1 = inlined_call_operand.hbm [shape: f32[2,32,96], index: 1, kind: input, shape index: {}]
  %s2 = inlined_call_operand.hbm [shape: f32[2,32,32], index: 2, kind: input, shape index: {}]
  %s3 = inlined_call_operand.hbm [shape: f32[2,32,64], index: 3, kind: input, shape index: {}]
  %s4 = inlined_call_operand.hbm [shape: f32[2,64,32], index: 4, kind: input, shape index: {}]
  %s5 = inlined_call_operand.hbm [shape: f32[2,6,64], index: 5, kind: input, shape index: {}]
  %s6 = inlined_call_operand.hbm [shape: f32[16,32], index: 6, kind: output, shape index: {}]
  %s7 = sld [smem:[#allocation0]]
  $region85: #{tpu_custom_call.1} parent=0
    _
  %s9 = ssub.s32 1, %s7
  %s10 = scalar_select 0, %s9, %s7
  $region1: #{tpu_custom_call.1} parent=0
    #allocation2 [shape = 'u8[8192]{0}', space=vmem, size = 0x2000, scoped, tag = 'input window, operand 0']
    #allocation3 [shape = 's32[2]{0}', space=sflag, size = 0x8, scoped, tag = 'scoped memory for tpu_custom_call.1']
    #allocation4 [shape = 's32[2]{0}', space=sflag, size = 0x8, scoped, tag = 'scoped memory for tpu_custom_call.1']
    #allocation5 [shape = 'u8[32768]{0}', space=vmem, size = 0x8000, scoped, tag = 'input window, operand 1']
    #allocation6 [shape = 's32[2]{0}', space=sflag, size = 0x8, scoped, tag = 'scoped memory for tpu_custom_call.1']
    #allocation7 [shape = 'u8[32768]{0}', space=vmem, size = 0x8000, scoped, tag = 'input window, operand 2']
    #allocation8 [shape = 'u8[32768]{0}', space=vmem, size = 0x8000, scoped, tag = 'input window, operand 3']
    #allocation9 [shape = 's32[2]{0}', space=sflag, size = 0x8, scoped, tag = 'scoped memory for tpu_custom_call.1']
    #allocation10 [shape = 'u8[65536]{0}', space=vmem, size = 0x10000, scoped, tag = 'input window, operand 4']
    #allocation11 [shape = 'u8[8192]{0}', space=vmem, size = 0x2000, scoped, tag = 'input window, operand 5']
    #allocation12 [shape = 's32[2]{0}', space=sflag, size = 0x8, scoped, tag = 'scoped memory for tpu_custom_call.1']
    #allocation13 [shape = 'u8[8192]{0}', space=vmem, size = 0x2000, scoped, tag = 'output window, operand 0']
    %11 = vsyncpa [#allocation3], 0
    %s12 = scalar_lea.sflag [#allocation3], 1
    %13 = vsyncpa %s12, 0
    %14 = vsyncpa [#allocation6], 0
    %s15 = scalar_lea.sflag [#allocation6], 1
    %16 = vsyncpa %s15, 0
    %17 = vsyncpa [#allocation9], 0
    %s18 = scalar_lea.sflag [#allocation9], 1
    %19 = vsyncpa %s18, 0
    %20 = vsyncpa [#allocation12], 0
    %s21 = scalar_lea.sflag [#allocation12], 1
    %22 = vsyncpa %s21, 0
    %23 = vsyncpa [#allocation4], 0
    %s24 = scalar_lea.sflag [#allocation4], 1
    %25 = vsyncpa %s24, 0
    loop: start=0, step=1, limit=6
    $region2: #{tpu_custom_call.1} parent=1 // loop_pre_header
      _
    $region3: #{tpu_custom_call.1} parent=1 // loop_header
      %s27 = sphi 0, %s31
      %p28 = scmp.ge.s32.totalorder %s27, 6
      %s34 = sphi 0, %s46
      %s35 = sphi 0, %s42
      %s36 = sphi 0, %s34
      %s37 = sphi 0, %s35
      %s38 = sphi 0, %s36
      %s39 = sphi 0, %s37
      %s49 = sphi 0, %s51
      %s52 = sphi 0, %s49
      %s53 = sphi 0, %s52
      %s69 = sphi 0, %s53
      %s75 = sphi 0, %s77
      %s78 = sphi 0, %s75
      %s79 = sphi 0, %s78
      %s95 = sphi 0, %s79
      %s101 = sphi 0, %s103
      %s104 = sphi 0, %s101
      %s105 = sphi 0, %s104
      %s121 = sphi 0, %s105
      %s127 = sphi 0, %s129
      %s130 = sphi 0, %s127
      %s131 = sphi 0, %s130
      %s147 = sphi 0, %s131
      %s153 = sphi 0, %s155
      %s156 = sphi 0, %s153
      %s157 = sphi 0, %s156
      %s173 = sphi 0, %s157
      %s179 = sphi 0, %s181
      %s182 = sphi 0, %s179
      %s183 = sphi 0, %s182
      %s199 = sphi 0, %s183
      %s205 = sphi 0, %s207
      %s208 = sphi 0, %s205
      %s209 = sphi 0, %s208
      %s225 = sphi 0, %s209
    $region4: #{tpu_custom_call.1} parent=1 // loop_header_branch
      %30 = sbr.rel (%p28) target = $region8
    $region5: #{tpu_custom_call.1} parent=1 // loop_body
      %s32 = ssub.s32 %s27, 1
      %s33 = ssub.s32 %s27, 2
      %s40 = sadd.s32 1, %s35
      %p41 = scmp.ge.s32.totalorder %s40, 2
      %s42 = scalar_select %p41, 0, %s40
      %s43 = sadd.s32 1, %s34
      %s44 = scalar_select %p41, %s43, %s34
      %p45 = scmp.ge.s32.totalorder %s44, 2
      %s46 = scalar_select %p45, 0, %s44
      %s47 = ssub.s32 %s34, %s46
      %p48 = scmp.eq.s32.totalorder %s47, 0
      %s50 = sadd.s32 %s49, 1
      %s51 = scalar_select %p48, %s49, %s50
      %p54 = pneg %p48
      %p55 = scmp.eq.s32.totalorder %s27, 3
      %p56 = por %p54, %p55
      %p57 = scmp.ne.s32.totalorder %s49, %s52
      %p58 = scmp.eq.s32.totalorder %s27, 0
      %p59 = por %p57, %p58
      %p60 = scmp.ne.s32.totalorder %s49, %s52
      %p61 = scmp.eq.s32.totalorder %s32, 3
      %p62 = por %p60, %p61
      %p63 = scmp.ne.s32.totalorder %s52, %s53
      %p64 = scmp.eq.s32.totalorder %s32, 0
      %p65 = por %p63, %p64
      %p66 = scmp.ne.s32.totalorder %s52, %s53
      %p67 = scmp.eq.s32.totalorder %s33, 3
      %p68 = por %p66, %p67
      %p70 = scmp.ne.s32.totalorder %s53, %s69
      %p71 = scmp.eq.s32.totalorder %s33, 0
      %p72 = por %p70, %p71
      %s73 = ssub.s32 %s35, %s42
      %p74 = scmp.eq.s32.totalorder %s73, 0
      %s76 = sadd.s32 %s75, 1
      %s77 = scalar_select %p74, %s75, %s76
      %p80 = pneg %p74
      %p81 = scmp.eq.s32.totalorder %s27, 3
      %p82 = por %p80, %p81
      %p83 = scmp.ne.s32.totalorder %s75, %s78
      %p84 = scmp.eq.s32.totalorder %s27, 0
      %p85 = por %p83, %p84
      %p86 = scmp.ne.s32.totalorder %s75, %s78
      %p87 = scmp.eq.s32.totalorder %s32, 3
      %p88 = por %p86, %p87
      %p89 = scmp.ne.s32.totalorder %s78, %s79
      %p90 = scmp.eq.s32.totalorder %s32, 0
      %p91 = por %p89, %p90
      %p92 = scmp.ne.s32.totalorder %s78, %s79
      %p93 = scmp.eq.s32.totalorder %s33, 3
      %p94 = por %p92, %p93
      %p96 = scmp.ne.s32.totalorder %s79, %s95
      %p97 = scmp.eq.s32.totalorder %s33, 0
      %p98 = por %p96, %p97
      %s99 = ssub.s32 %s35, %s42
      %p100 = scmp.eq.s32.totalorder %s99, 0
      %s102 = sadd.s32 %s101, 1
      %s103 = scalar_select %p100, %s101, %s102
      %p106 = pneg %p100
      %p107 = scmp.eq.s32.totalorder %s27, 3
      %p108 = por %p106, %p107
      %p109 = scmp.ne.s32.totalorder %s101, %s104
      %p110 = scmp.eq.s32.totalorder %s27, 0
      %p111 = por %p109, %p110
      %p112 = scmp.ne.s32.totalorder %s101, %s104
      %p113 = scmp.eq.s32.totalorder %s32, 3
      %p114 = por %p112, %p113
      %p115 = scmp.ne.s32.totalorder %s104, %s105
      %p116 = scmp.eq.s32.totalorder %s32, 0
      %p117 = por %p115, %p116
      %p118 = scmp.ne.s32.totalorder %s104, %s105
      %p119 = scmp.eq.s32.totalorder %s33, 3
      %p120 = por %p118, %p119
      %p122 = scmp.ne.s32.totalorder %s105, %s121
      %p123 = scmp.eq.s32.totalorder %s33, 0
      %p124 = por %p122, %p123
      %s125 = ssub.s32 %s35, %s42
      %p126 = scmp.eq.s32.totalorder %s125, 0
      %s128 = sadd.s32 %s127, 1
      %s129 = scalar_select %p126, %s127, %s128
      %p132 = pneg %p126
      %p133 = scmp.eq.s32.totalorder %s27, 3
      %p134 = por %p132, %p133
      %p135 = scmp.ne.s32.totalorder %s127, %s130
      %p136 = scmp.eq.s32.totalorder %s27, 0
      %p137 = por %p135, %p136
      %p138 = scmp.ne.s32.totalorder %s127, %s130
      %p139 = scmp.eq.s32.totalorder %s32, 3
      %p140 = por %p138, %p139
      %p141 = scmp.ne.s32.totalorder %s130, %s131
      %p142 = scmp.eq.s32.totalorder %s32, 0
      %p143 = por %p141, %p142
      %p144 = scmp.ne.s32.totalorder %s130, %s131
      %p145 = scmp.eq.s32.totalorder %s33, 3
      %p146 = por %p144, %p145
      %p148 = scmp.ne.s32.totalorder %s131, %s147
      %p149 = scmp.eq.s32.totalorder %s33, 0
      %p150 = por %p148, %p149
      %s151 = ssub.s32 %s35, %s42
      %p152 = scmp.eq.s32.totalorder %s151, 0
      %s154 = sadd.s32 %s153, 1
      %s155 = scalar_select %p152, %s153, %s154
      %p158 = pneg %p152
      %p159 = scmp.eq.s32.totalorder %s27, 3
      %p160 = por %p158, %p159
      %p161 = scmp.ne.s32.totalorder %s153, %s156
      %p162 = scmp.eq.s32.totalorder %s27, 0
      %p163 = por %p161, %p162
      %p164 = scmp.ne.s32.totalorder %s153, %s156
      %p165 = scmp.eq.s32.totalorder %s32, 3
      %p166 = por %p164, %p165
      %p167 = scmp.ne.s32.totalorder %s156, %s157
      %p168 = scmp.eq.s32.totalorder %s32, 0
      %p169 = por %p167, %p168
      %p170 = scmp.ne.s32.totalorder %s156, %s157
      %p171 = scmp.eq.s32.totalorder %s33, 3
      %p172 = por %p170, %p171
      %p174 = scmp.ne.s32.totalorder %s157, %s173
      %p175 = scmp.eq.s32.totalorder %s33, 0
      %p176 = por %p174, %p175
      %s177 = ssub.s32 %s35, %s42
      %p178 = scmp.eq.s32.totalorder %s177, 0
      %s180 = sadd.s32 %s179, 1
      %s181 = scalar_select %p178, %s179, %s180
      %p184 = pneg %p178
      %p185 = scmp.eq.s32.totalorder %s27, 3
      %p186 = por %p184, %p185
      %p187 = scmp.ne.s32.totalorder %s179, %s182
      %p188 = scmp.eq.s32.totalorder %s27, 0
      %p189 = por %p187, %p188
      %p190 = scmp.ne.s32.totalorder %s179, %s182
      %p191 = scmp.eq.s32.totalorder %s32, 3
      %p192 = por %p190, %p191
      %p193 = scmp.ne.s32.totalorder %s182, %s183
      %p194 = scmp.eq.s32.totalorder %s32, 0
      %p195 = por %p193, %p194
      %p196 = scmp.ne.s32.totalorder %s182, %s183
      %p197 = scmp.eq.s32.totalorder %s33, 3
      %p198 = por %p196, %p197
      %p200 = scmp.ne.s32.totalorder %s183, %s199
      %p201 = scmp.eq.s32.totalorder %s33, 0
      %p202 = por %p200, %p201
      %s203 = ssub.s32 %s34, %s46
      %p204 = scmp.eq.s32.totalorder %s203, 0
      %s206 = sadd.s32 %s205, 1
      %s207 = scalar_select %p204, %s205, %s206
      %p210 = pneg %p204
      %p211 = scmp.eq.s32.totalorder %s27, 3
      %p212 = por %p210, %p211
      %p213 = scmp.ne.s32.totalorder %s205, %s208
      %p214 = scmp.eq.s32.totalorder %s27, 0
      %p215 = por %p213, %p214
      %p216 = scmp.ne.s32.totalorder %s205, %s208
      %p217 = scmp.eq.s32.totalorder %s32, 3
      %p218 = por %p216, %p217
      %p219 = scmp.ne.s32.totalorder %s208, %s209
      %p220 = scmp.eq.s32.totalorder %s32, 0
      %p221 = por %p219, %p220
      %p222 = scmp.ne.s32.totalorder %s208, %s209
      %p223 = scmp.eq.s32.totalorder %s33, 3
      %p224 = por %p222, %p223
      %p226 = scmp.ne.s32.totalorder %s209, %s225
      %p227 = scmp.eq.s32.totalorder %s33, 0
      %p228 = por %p226, %p227
      %p229 = scmp.le.s32.totalorder 1, %s27
      %p230 = scmp.lt.s32.totalorder %s27, 5
      %p231 = pnand %p229, %p230
      %p232 = pneg %p231
      // Predicated region
      $region9: #{tpu_custom_call.1} parent=5 // pred_check
        _
      $region10: #{tpu_custom_call.1} parent=5 // pred_check_branch
        %234 = sbr.rel (%p231) target = $region12
      $region11: #{tpu_custom_call.1} parent=5 // pred_region
        %s235 = ssub.s32 %s27, 1
      $region12: #{tpu_custom_call.1} parent=5 // pred_fallthru
        _
      %p236 = scmp.lt.s32.totalorder %s27, 4
      // Predicated region
      $region13: #{tpu_custom_call.1} parent=5 // pred_check
        %p237 = pneg %p236
      $region14: #{tpu_custom_call.1} parent=5 // pred_check_branch
        %239 = sbr.rel (%p237) target = $region16
      $region15: #{tpu_custom_call.1} parent=5 // pred_region
        // Predicated region
        $region17: #{tpu_custom_call.1} parent=15 // pred_check
          %p240 = pneg %p59
        $region18: #{tpu_custom_call.1} parent=15 // pred_check_branch
          %242 = sbr.rel (%p240) target = $region20
        $region19: #{tpu_custom_call.1} parent=15 // pred_region
          %s243 = sand.u32 %s49, 1
          %s244 = scalar_lea.sflag [#allocation3], %s243
          %s245 = sand.u32 %s49, 1
          %s246 = smul.addr %s245, 8
          %s247 = scalar_lea.vmem [#allocation2], %s246
          %s249 = ssub.s32 128, 128
          %250 = vsyncadd %s244, %s249
          %s251 = smul.addr %s34, 128
          %s252 = scalar_lea.hbm %s0, %s251
          %s254 = sshll.u32 %s247, 4
          %s255 = int_to_ptr.vmem [resolvable:$true] %s254
          %257 = dma.hbm_to_vmem [thread:$0]  %s252, 128, %s255, %s244
        $region20: #{tpu_custom_call.1} parent=15 // pred_fallthru
          _
        // Predicated region
        $region21: #{tpu_custom_call.1} parent=15 // pred_check
          %p258 = pneg %p85
        $region22: #{tpu_custom_call.1} parent=15 // pred_check_branch
          %260 = sbr.rel (%p258) target = $region24
        $region23: #{tpu_custom_call.1} parent=15 // pred_region
          %s261 = sand.u32 %s27, 1
          %s262 = scalar_lea.sflag [#allocation6], %s261
          %s263 = sand.u32 %s75, 1
          %s264 = smul.addr %s263, 32
          %s265 = scalar_lea.vmem [#allocation5], %s264
          %s267 = ssub.s32 512, 512
          %268 = vsyncadd %s262, %s267
          %s269 = smul.addr %s35, 4
          %s270 = smul.addr %s269, 128
          %s271 = scalar_lea.hbm %s1, %s270
          %s272 = sshll.u32 %s265, 4
          %s273 = int_to_ptr.vmem [resolvable:$true] %s272
          %278 = dma.hbm_to_vmem [thread:$0]  %s271, 512, %s273, %s262, 128, 128, 8
        $region24: #{tpu_custom_call.1} parent=15 // pred_fallthru
          _
        // Predicated region
        $region25: #{tpu_custom_call.1} parent=15 // pred_check
          %p279 = pneg %p111
        $region26: #{tpu_custom_call.1} parent=15 // pred_check_branch
          %281 = sbr.rel (%p279) target = $region28
        $region27: #{tpu_custom_call.1} parent=15 // pred_region
          %s282 = sand.u32 %s27, 1
          %s283 = scalar_lea.sflag [#allocation6], %s282
          %s284 = sand.u32 %s101, 1
          %s285 = smul.addr %s284, 32
          %s286 = scalar_lea.vmem [#allocation7], %s285
          %s288 = ssub.s32 512, 512
          %289 = vsyncadd %s283, %s288
          %s290 = smul.addr %s35, 4
          %s291 = smul.addr %s290, 128
          %s292 = scalar_lea.hbm %s2, %s291
          %s293 = sshll.u32 %s286, 4
          %s294 = int_to_ptr.vmem [resolvable:$true] %s293
          %299 = dma.hbm_to_vmem [thread:$0]  %s292, 512, %s294, %s283, 128, 128, 8
        $region28: #{tpu_custom_call.1} parent=15 // pred_fallthru
          _
        // Predicated region
        $region29: #{tpu_custom_call.1} parent=15 // pred_check
          %p300 = pneg %p137
        $region30: #{tpu_custom_call.1} parent=15 // pred_check_branch
          %302 = sbr.rel (%p300) target = $region32
        $region31: #{tpu_custom_call.1} parent=15 // pred_region
          %s303 = sand.u32 %s27, 1
          %s304 = scalar_lea.sflag [#allocation9], %s303
          %s305 = sand.u32 %s127, 1
          %s306 = smul.addr %s305, 32
          %s307 = scalar_lea.vmem [#allocation8], %s306
          %s309 = ssub.s32 512, 512
          %310 = vsyncadd %s304, %s309
          %s311 = smul.addr %s35, 4
          %s312 = smul.addr %s311, 128
          %s313 = scalar_lea.hbm %s3, %s312
          %s314 = sshll.u32 %s307, 4
          %s315 = int_to_ptr.vmem [resolvable:$true] %s314
          %320 = dma.hbm_to_vmem [thread:$0]  %s313, 512, %s315, %s304, 128, 128, 8
        $region32: #{tpu_custom_call.1} parent=15 // pred_fallthru
          _
        // Predicated region
        $region33: #{tpu_custom_call.1} parent=15 // pred_check
          %p321 = pneg %p163
        $region34: #{tpu_custom_call.1} parent=15 // pred_check_branch
          %323 = sbr.rel (%p321) target = $region36
        $region35: #{tpu_custom_call.1} parent=15 // pred_region
          %s324 = sand.u32 %s27, 1
          %s325 = scalar_lea.sflag [#allocation9], %s324
          %s326 = sand.u32 %s153, 1
          %s327 = smul.addr %s326, 64
          %s328 = scalar_lea.vmem [#allocation10], %s327
          %s330 = ssub.s32 1024, 1024
          %331 = vsyncadd %s325, %s330
          %s332 = smul.addr %s35, 8
          %s333 = smul.addr %s332, 128
          %s334 = scalar_lea.hbm %s4, %s333
          %s335 = sshll.u32 %s328, 4
          %s336 = int_to_ptr.vmem [resolvable:$true] %s335
          %341 = dma.hbm_to_vmem [thread:$0]  %s334, 1024, %s336, %s325, 128, 128, 8
        $region36: #{tpu_custom_call.1} parent=15 // pred_fallthru
          _
        // Predicated region
        $region37: #{tpu_custom_call.1} parent=15 // pred_check
          %p342 = pneg %p189
        $region38: #{tpu_custom_call.1} parent=15 // pred_check_branch
          %344 = sbr.rel (%p342) target = $region40
        $region39: #{tpu_custom_call.1} parent=15 // pred_region
          %s345 = sand.u32 %s179, 1
          %s346 = scalar_lea.sflag [#allocation12], %s345
          %s347 = sand.u32 %s179, 1
          %s348 = smul.addr %s347, 8
          %s349 = scalar_lea.vmem [#allocation11], %s348
          %s351 = ssub.s32 128, 128
          %352 = vsyncadd %s346, %s351
          %s353 = smul.addr %s35, 128
          %s354 = scalar_lea.hbm %s5, %s353
          %s356 = sshll.u32 %s349, 4
          %s357 = int_to_ptr.vmem [resolvable:$true] %s356
          %359 = dma.hbm_to_vmem [thread:$0]  %s354, 128, %s357, %s346
        $region40: #{tpu_custom_call.1} parent=15 // pred_fallthru
          _
      $region16: #{tpu_custom_call.1} parent=5 // pred_fallthru
        _
      %p360 = scmp.le.s32.totalorder 1, %s27
      %p361 = scmp.lt.s32.totalorder %s27, 5
      %p362 = pnand %p360, %p361
      %p363 = pneg %p362
      // Predicated region
      $region41: #{tpu_custom_call.1} parent=5 // pred_check
        _
      $region42: #{tpu_custom_call.1} parent=5 // pred_check_branch
        %365 = sbr.rel (%p362) target = $region44
      $region43: #{tpu_custom_call.1} parent=5 // pred_region
        %s366 = ssub.s32 %s27, 1
        %s367 = sand.u32 %s52, 1
        %s368 = scalar_lea.sflag [#allocation3], %s367
        %s369 = sand.u32 %s52, 1
        %s370 = smul.addr %s369, 8
        %s371 = scalar_lea.vmem [#allocation2], %s370
        // Predicated region
        $region45: #{tpu_custom_call.1} parent=43 // pred_check
          %p372 = pneg %p65
        $region46: #{tpu_custom_call.1} parent=43 // pred_check_branch
          %374 = sbr.rel (%p372) target = $region48
        $region47: #{tpu_custom_call.1} parent=43 // pred_region
          %375 = dma.done %s368, 128
        $region48: #{tpu_custom_call.1} parent=43 // pred_fallthru
          _
        %s376 = sand.u32 %s32, 1
        %s377 = scalar_lea.sflag [#allocation6], %s376
        %s378 = sand.u32 %s78, 1
        %s379 = smul.addr %s378, 32
        %s380 = scalar_lea.vmem [#allocation5], %s379
        // Predicated region
        $region49: #{tpu_custom_call.1} parent=43 // pred_check
          %p381 = pneg %p91
        $region50: #{tpu_custom_call.1} parent=43 // pred_check_branch
          %383 = sbr.rel (%p381) target = $region52
        $region51: #{tpu_custom_call.1} parent=43 // pred_region
          %384 = dma.done %s377, 512
        $region52: #{tpu_custom_call.1} parent=43 // pred_fallthru
          _
        %s385 = sand.u32 %s32, 1
        %s386 = scalar_lea.sflag [#allocation6], %s385
        %s387 = sand.u32 %s104, 1
        %s388 = smul.addr %s387, 32
        %s389 = scalar_lea.vmem [#allocation7], %s388
        // Predicated region
        $region53: #{tpu_custom_call.1} parent=43 // pred_check
          %p390 = pneg %p117
        $region54: #{tpu_custom_call.1} parent=43 // pred_check_branch
          %392 = sbr.rel (%p390) target = $region56
        $region55: #{tpu_custom_call.1} parent=43 // pred_region
          %393 = dma.done %s386, 512
        $region56: #{tpu_custom_call.1} parent=43 // pred_fallthru
          _
        %s394 = sand.u32 %s32, 1
        %s395 = scalar_lea.sflag [#allocation9], %s394
        %s396 = sand.u32 %s130, 1
        %s397 = smul.addr %s396, 32
        %s398 = scalar_lea.vmem [#allocation8], %s397
        // Predicated region
        $region57: #{tpu_custom_call.1} parent=43 // pred_check
          %p399 = pneg %p143
        $region58: #{tpu_custom_call.1} parent=43 // pred_check_branch
          %401 = sbr.rel (%p399) target = $region60
        $region59: #{tpu_custom_call.1} parent=43 // pred_region
          %402 = dma.done %s395, 512
        $region60: #{tpu_custom_call.1} parent=43 // pred_fallthru
          _
        %s403 = sand.u32 %s32, 1
        %s404 = scalar_lea.sflag [#allocation9], %s403
        %s405 = sand.u32 %s156, 1
        %s406 = smul.addr %s405, 64
        %s407 = scalar_lea.vmem [#allocation10], %s406
        // Predicated region
        $region61: #{tpu_custom_call.1} parent=43 // pred_check
          %p408 = pneg %p169
        $region62: #{tpu_custom_call.1} parent=43 // pred_check_branch
          %410 = sbr.rel (%p408) target = $region64
        $region63: #{tpu_custom_call.1} parent=43 // pred_region
          %411 = dma.done %s404, 1024
        $region64: #{tpu_custom_call.1} parent=43 // pred_fallthru
          _
        %s412 = sand.u32 %s182, 1
        %s413 = scalar_lea.sflag [#allocation12], %s412
        %s414 = sand.u32 %s182, 1
        %s415 = smul.addr %s414, 8
        %s416 = scalar_lea.vmem [#allocation11], %s415
        // Predicated region
        $region65: #{tpu_custom_call.1} parent=43 // pred_check
          %p417 = pneg %p195
        $region66: #{tpu_custom_call.1} parent=43 // pred_check_branch
          %419 = sbr.rel (%p417) target = $region68
        $region67: #{tpu_custom_call.1} parent=43 // pred_region
          %420 = dma.done %s413, 128
        $region68: #{tpu_custom_call.1} parent=43 // pred_fallthru
          _
        %s421 = sand.u32 %s52, 1
        %s422 = scalar_lea.sflag [#allocation3], %s421
        %s423 = sand.u32 %s52, 1
        %s424 = smul.addr %s423, 8
        %s425 = scalar_lea.vmem [#allocation2], %s424
        %p426 = pneg %p65
        %p427 = pneg %p62
        %s428 = sand.u32 %s32, 1
        %s429 = scalar_lea.sflag [#allocation6], %s428
        %s430 = sand.u32 %s78, 1
        %s431 = smul.addr %s430, 32
        %s432 = scalar_lea.vmem [#allocation5], %s431
        %p433 = pneg %p91
        %p434 = pneg %p88
        %s435 = sand.u32 %s32, 1
        %s436 = scalar_lea.sflag [#allocation6], %s435
        %s437 = sand.u32 %s104, 1
        %s438 = smul.addr %s437, 32
        %s439 = scalar_lea.vmem [#allocation7], %s438
        %p440 = pneg %p117
        %p441 = pneg %p114
        %s442 = sand.u32 %s32, 1
        %s443 = scalar_lea.sflag [#allocation9], %s442
        %s444 = sand.u32 %s130, 1
        %s445 = smul.addr %s444, 32
        %s446 = scalar_lea.vmem [#allocation8], %s445
        %p447 = pneg %p143
        %p448 = pneg %p140
        %s449 = sand.u32 %s32, 1
        %s450 = scalar_lea.sflag [#allocation9], %s449
        %s451 = sand.u32 %s156, 1
        %s452 = smul.addr %s451, 64
        %s453 = scalar_lea.vmem [#allocation10], %s452
        %p454 = pneg %p169
        %p455 = pneg %p166
        %s456 = sand.u32 %s182, 1
        %s457 = scalar_lea.sflag [#allocation12], %s456
        %s458 = sand.u32 %s182, 1
        %s459 = smul.addr %s458, 8
        %s460 = scalar_lea.vmem [#allocation11], %s459
        %p461 = pneg %p195
        %p462 = pneg %p192
        %p463 = pneg %p221
        %p464 = pneg %p218
        %s465 = sand.u32 %s208, 1
        %s466 = scalar_lea.sflag [#allocation4], %s465
        %s467 = sand.u32 %s208, 1
        %s468 = smul.addr %s467, 8
        %s469 = scalar_lea.vmem [#allocation13], %s468
        %p470 = scmp.eq.s32.totalorder %s37, 0
        // Predicated region
        $region69: #{tpu_custom_call.1} parent=43 // pred_check
          %p471 = pneg %p470
        $region70: #{tpu_custom_call.1} parent=43 // pred_check_branch
          %473 = sbr.rel (%p471) target = $region72
        $region71: #{tpu_custom_call.1} parent=43 // pred_region
          %v474 = vld [vmem:[%s371] sm:$0xff]
          %vm475 = vcmask 261120
          %476 = vst.msk [vmem:[%s469] sm:$0xff] %vm475, %v474
        $region72: #{tpu_custom_call.1} parent=43 // pred_fallthru
          _
        %v477 = vld [vmem:[%s469] sm:$0xff]
        %v478 = vld [vmem:[%s416] sm:$0x3f]
        %v479 = vld [vmem:[%s380] sm:$0xff]
        %v480 = vld [vmem:[%s380 + $0x8] sm:$0xff]
        %v481 = vld [vmem:[%s380 + $0x10] sm:$0xff]
        %v482 = vld [vmem:[%s380 + $0x18] sm:$0xff]
        %vm483 = vcmask 261120
        %v485 = vsel %vm483, %v477, 0
        %487 = vmatprep.subr.mxu0 0.0
        %488 = vmatpush1.msra.mxu0 %v479
        %489 = vmatprep.subr.mxu0 0.0
        %490 = vmatpush1.msra.mxu0 %v480
        %491 = vmatprep.subr.mxu0 0.0
        %492 = vmatpush1.msra.mxu0 %v481
        %493 = vmatprep.subr.mxu0 0.0
        %494 = vmatpush1.msra.mxu0 %v482
        %495 = vmatprep.subr.mxu0 0.0
        %496 = vmatpush1.msra.mxu0 0.0
        %497 = vmatprep.subr.mxu0 0.0
        %498 = vmatpush1.msra.mxu0 0.0
        %499 = vmatprep.subr.mxu0 0.0
        %500 = vmatpush1.msra.mxu0 0.0
        %501 = vmatprep.subr.mxu0 0.0
        %502 = vmatpush1.msra.mxu0 0.0
        %503 = vmatprep.subr.mxu0 0.0
        %504 = vmatpush1.msra.mxu0 0.0
        %505 = vmatprep.subr.mxu0 0.0
        %506 = vmatpush1.msra.mxu0 0.0
        %507 = vmatprep.subr.mxu0 0.0
        %508 = vmatpush1.msra.mxu0 0.0
        %509 = vmatprep.subr.mxu0 0.0
        %510 = vmatpush1.msra.mxu0 0.0
        %511 = vmatprep.subr.mxu0 0.0
        %512 = vmatpush1.msra.mxu0 0.0
        %513 = vmatprep.subr.mxu0 0.0
        %514 = vmatpush1.msra.mxu0 0.0
        %515 = vmatprep.subr.mxu0 0.0
        %516 = vmatpush1.msra.mxu0 0.0
        %517 = vmatprep.subr.mxu0 0.0
        %518 = vmatpush1.msra.mxu0 0.0
        %519 = vmatprep.subr.mxu0 0.0
        %520 = vmatpush1.msra.mxu0 0.0
        %521 = vmatprep.subr.mxu0 0.0
        %522 = vmatpush1.msra.mxu0 0.0
        %523 = vmatprep.subr.mxu0 0.0
        %524 = vmatpush1.msra.mxu0 0.0
        %525 = vmatprep.subr.mxu0 0.0
        %526 = vmatpush1.msra.mxu0 0.0
        %527 = vmatprep.subr.mxu0 0.0
        %528 = vmatpush1.msra.mxu0 0.0
        %529 = vmatprep.subr.mxu0 0.0
        %530 = vmatpush1.msra.mxu0 0.0
        %531 = vmatprep.subr.mxu0 0.0
        %532 = vmatpush1.msra.mxu0 0.0
        %533 = vmatprep.subr.mxu0 0.0
        %534 = vmatpush1.msra.mxu0 0.0
        %535 = vmatprep.subr.mxu0 0.0
        %536 = vmatpush1.msra.mxu0 0.0
        %537 = vmatprep.subr.mxu0 0.0
        %538 = vmatpush1.msra.mxu0 0.0
        %539 = vmatprep.subr.mxu0 0.0
        %540 = vmatpush1.msra.mxu0 0.0
        %541 = vmatprep.subr.mxu0 0.0
        %542 = vmatpush1.msra.mxu0 0.0
        %543 = vmatprep.subr.mxu0 0.0
        %544 = vmatpush1.msra.mxu0 0.0
        %545 = vmatprep.subr.mxu0 0.0
        %546 = vmatpush1.msra.mxu0 0.0
        %547 = vmatprep.subr.mxu0 0.0
        %548 = vmatpush1.msra.mxu0 0.0
        %549 = vmatprep.subr.mxu0 0.0
        %550 = vmatpush1.msra.mxu0 0.0
        %551 = vmatprep.mubr.f32.mxu0 0.0
        %552 = vmatmul.mubr.f32.gmra.mrb[0].mxu0 %v485
        %v553 = vpop.f32.mrb[0].mxu0
        %v554 = vadd.f32 0.0, %v553
        %v555 = vpop.f32.mrb[0].mxu0
        %556 = vdwg.mxu0
        %v557 = vmul.f32 %v554, 0.35355338
        %559 = vrot.lane.b32.xlu0 %v554, 96
        %v560 = vpop.permute.xlu0 %559
        %vm561 = vcmask 64512
        %v563 = vsel %vm561, %v557, 0
        %v565 = vsel %vm561, %v560, 0
        %567 = vmatprep.subr.mxu0 0.0
        %568 = vmatpush1.xpose.msra.mxu0 %v565
        %569 = vmatprep.subr.mxu0 0.0
        %570 = vmatpush1.xpose.msra.mxu0 0.0
        %571 = vmatprep.subr.mxu0 0.0
        %572 = vmatpush1.xpose.msra.mxu0 0.0
        %573 = vmatprep.subr.mxu0 0.0
        %574 = vmatpush1.xpose.msra.mxu0 0.0
        %575 = vmatprep.subr.mxu0 0.0
        %576 = vmatpush1.xpose.msra.mxu0 0.0
        %577 = vmatprep.subr.mxu0 0.0
        %578 = vmatpush1.xpose.msra.mxu0 0.0
        %579 = vmatprep.subr.mxu0 0.0
        %580 = vmatpush1.xpose.msra.mxu0 0.0
        %581 = vmatprep.subr.mxu0 0.0
        %582 = vmatpush1.xpose.msra.mxu0 0.0
        %583 = vmatprep.subr.mxu0 0.0
        %584 = vmatpush1.xpose.msra.mxu0 0.0
        %585 = vmatprep.subr.mxu0 0.0
        %586 = vmatpush1.xpose.msra.mxu0 0.0
        %587 = vmatprep.subr.mxu0 0.0
        %588 = vmatpush1.xpose.msra.mxu0 0.0
        %589 = vmatprep.subr.mxu0 0.0
        %590 = vmatpush1.xpose.msra.mxu0 0.0
        %591 = vmatprep.subr.mxu0 0.0
        %592 = vmatpush1.xpose.msra.mxu0 0.0
        %593 = vmatprep.subr.mxu0 0.0
        %594 = vmatpush1.xpose.msra.mxu0 0.0
        %595 = vmatprep.subr.mxu0 0.0
        %596 = vmatpush1.xpose.msra.mxu0 0.0
        %597 = vmatprep.subr.mxu0 0.0
        %598 = vmatpush1.xpose.msra.mxu0 0.0
        %599 = vmatprep.subr.mxu0 0.0
        %600 = vmatpush1.xpose.msra.mxu0 0.0
        %601 = vmatprep.subr.mxu0 0.0
        %602 = vmatpush1.xpose.msra.mxu0 0.0
        %603 = vmatprep.subr.mxu0 0.0
        %604 = vmatpush1.xpose.msra.mxu0 0.0
        %605 = vmatprep.subr.mxu0 0.0
        %606 = vmatpush1.xpose.msra.mxu0 0.0
        %607 = vmatprep.subr.mxu0 0.0
        %608 = vmatpush1.xpose.msra.mxu0 0.0
        %609 = vmatprep.subr.mxu0 0.0
        %610 = vmatpush1.xpose.msra.mxu0 0.0
        %611 = vmatprep.subr.mxu0 0.0
        %612 = vmatpush1.xpose.msra.mxu0 0.0
        %613 = vmatprep.subr.mxu0 0.0
        %614 = vmatpush1.xpose.msra.mxu0 0.0
        %615 = vmatprep.subr.mxu0 0.0
        %616 = vmatpush1.xpose.msra.mxu0 0.0
        %617 = vmatprep.subr.mxu0 0.0
        %618 = vmatpush1.xpose.msra.mxu0 0.0
        %619 = vmatprep.subr.mxu0 0.0
        %620 = vmatpush1.xpose.msra.mxu0 0.0
        %621 = vmatprep.subr.mxu0 0.0
        %622 = vmatpush1.xpose.msra.mxu0 0.0
        %623 = vmatprep.subr.mxu0 0.0
        %624 = vmatpush1.xpose.msra.mxu0 0.0
        %625 = vmatprep.subr.mxu0 0.0
        %626 = vmatpush1.xpose.msra.mxu0 0.0
        %627 = vmatprep.subr.mxu0 0.0
        %628 = vmatpush1.xpose.msra.mxu0 0.0
        %629 = vmatprep.subr.mxu0 0.0
        %630 = vmatpush1.xpose.msra.mxu0 0.0
        %631 = vmatprep.mubr.f32.mxu0 0.0
        %632 = vmatmul.mubr.f32.gmra.mrb[0].mxu0 %v563
        %v633 = vpop.f32.mrb[0].mxu0
        %v634 = vadd.f32 0.0, %v633
        %v635 = vpop.f32.mrb[0].mxu0
        %636 = vdwg.mxu0
        %v637 = vsel %vm561, %v634, -inf
        %638 = vmax.xlane.f32.xlu0 %v637
        %v639 = vpop.xlane.xlu0 %638
        %v640 = vsub.f32 %v634, %v639
        %v641 = vmul.f32 %v640, 1.442695
        %v642 = vpow.pop %v641
        %v643 = vsel %vm561, %v642, 0.0
        %644 = vadd.xlane.f32.xlu0 %v643
        %v645 = vpop.xlane.xlu0 %644
        %v646 = vrcp.pop %v645
        %v647 = vmul.f32 %v642, %v646
        %648 = vrot.lane.b32.xlu0 %v554, 64
        %v649 = vpop.permute.xlu0 %648
        %v652 = vsel %vm561, %v647, 0
        %654 = vmatprep.subr.mxu0 0.0
        %655 = vmatpush1.msra.mxu0 %v649
        %656 = vmatprep.subr.mxu0 0.0
        %657 = vmatpush1.msra.mxu0 0.0
        %658 = vmatprep.subr.mxu0 0.0
        %659 = vmatpush1.msra.mxu0 0.0
        %660 = vmatprep.subr.mxu0 0.0
        %661 = vmatpush1.msra.mxu0 0.0
        %662 = vmatprep.subr.mxu0 0.0
        %663 = vmatpush1.msra.mxu0 0.0
        %664 = vmatprep.subr.mxu0 0.0
        %665 = vmatpush1.msra.mxu0 0.0
        %666 = vmatprep.subr.mxu0 0.0
        %667 = vmatpush1.msra.mxu0 0.0
        %668 = vmatprep.subr.mxu0 0.0
        %669 = vmatpush1.msra.mxu0 0.0
        %670 = vmatprep.subr.mxu0 0.0
        %671 = vmatpush1.msra.mxu0 0.0
        %672 = vmatprep.subr.mxu0 0.0
        %673 = vmatpush1.msra.mxu0 0.0
        %674 = vmatprep.subr.mxu0 0.0
        %675 = vmatpush1.msra.mxu0 0.0
        %676 = vmatprep.subr.mxu0 0.0
        %677 = vmatpush1.msra.mxu0 0.0
        %678 = vmatprep.subr.mxu0 0.0
        %679 = vmatpush1.msra.mxu0 0.0
        %680 = vmatprep.subr.mxu0 0.0
        %681 = vmatpush1.msra.mxu0 0.0
        %682 = vmatprep.subr.mxu0 0.0
        %683 = vmatpush1.msra.mxu0 0.0
        %684 = vmatprep.subr.mxu0 0.0
        %685 = vmatpush1.msra.mxu0 0.0
        %686 = vmatprep.subr.mxu0 0.0
        %687 = vmatpush1.msra.mxu0 0.0
        %688 = vmatprep.subr.mxu0 0.0
        %689 = vmatpush1.msra.mxu0 0.0
        %690 = vmatprep.subr.mxu0 0.0
        %691 = vmatpush1.msra.mxu0 0.0
        %692 = vmatprep.subr.mxu0 0.0
        %693 = vmatpush1.msra.mxu0 0.0
        %694 = vmatprep.subr.mxu0 0.0
        %695 = vmatpush1.msra.mxu0 0.0
        %696 = vmatprep.subr.mxu0 0.0
        %697 = vmatpush1.msra.mxu0 0.0
        %698 = vmatprep.subr.mxu0 0.0
        %699 = vmatpush1.msra.mxu0 0.0
        %700 = vmatprep.subr.mxu0 0.0
        %701 = vmatpush1.msra.mxu0 0.0
        %702 = vmatprep.subr.mxu0 0.0
        %703 = vmatpush1.msra.mxu0 0.0
        %704 = vmatprep.subr.mxu0 0.0
        %705 = vmatpush1.msra.mxu0 0.0
        %706 = vmatprep.subr.mxu0 0.0
        %707 = vmatpush1.msra.mxu0 0.0
        %708 = vmatprep.subr.mxu0 0.0
        %709 = vmatpush1.msra.mxu0 0.0
        %710 = vmatprep.subr.mxu0 0.0
        %711 = vmatpush1.msra.mxu0 0.0
        %712 = vmatprep.subr.mxu0 0.0
        %713 = vmatpush1.msra.mxu0 0.0
        %714 = vmatprep.subr.mxu0 0.0
        %715 = vmatpush1.msra.mxu0 0.0
        %716 = vmatprep.subr.mxu0 0.0
        %717 = vmatpush1.msra.mxu0 0.0
        %718 = vmatprep.mubr.f32.mxu0 0.0
        %719 = vmatmul.mubr.f32.gmra.mrb[0].mxu0 %v652
        %v720 = vpop.f32.mrb[0].mxu0
        %v721 = vadd.f32 0.0, %v720
        %v722 = vpop.f32.mrb[0].mxu0
        %723 = vdwg.mxu0
        %724 = vrot.lane.b32.xlu0 %v557, 120
        %v725 = vpop.permute.xlu0 %724
        %726 = vrot.lane.b32.xlu0 %v554, 88
        %v727 = vpop.permute.xlu0 %726
        %v728 = vsel %vm561, %v725, 0
        %v730 = vsel %vm561, %v727, 0
        %732 = vmatprep.subr.mxu0 0.0
        %733 = vmatpush1.xpose.msra.mxu0 %v730
        %734 = vmatprep.subr.mxu0 0.0
        %735 = vmatpush1.xpose.msra.mxu0 0.0
        %736 = vmatprep.subr.mxu0 0.0
        %737 = vmatpush1.xpose.msra.mxu0 0.0
        %738 = vmatprep.subr.mxu0 0.0
        %739 = vmatpush1.xpose.msra.mxu0 0.0
        %740 = vmatprep.subr.mxu0 0.0
        %741 = vmatpush1.xpose.msra.mxu0 0.0
        %742 = vmatprep.subr.mxu0 0.0
        %743 = vmatpush1.xpose.msra.mxu0 0.0
        %744 = vmatprep.subr.mxu0 0.0
        %745 = vmatpush1.xpose.msra.mxu0 0.0
        %746 = vmatprep.subr.mxu0 0.0
        %747 = vmatpush1.xpose.msra.mxu0 0.0
        %748 = vmatprep.subr.mxu0 0.0
        %749 = vmatpush1.xpose.msra.mxu0 0.0
        %750 = vmatprep.subr.mxu0 0.0
        %751 = vmatpush1.xpose.msra.mxu0 0.0
        %752 = vmatprep.subr.mxu0 0.0
        %753 = vmatpush1.xpose.msra.mxu0 0.0
        %754 = vmatprep.subr.mxu0 0.0
        %755 = vmatpush1.xpose.msra.mxu0 0.0
        %756 = vmatprep.subr.mxu0 0.0
        %757 = vmatpush1.xpose.msra.mxu0 0.0
        %758 = vmatprep.subr.mxu0 0.0
        %759 = vmatpush1.xpose.msra.mxu0 0.0
        %760 = vmatprep.subr.mxu0 0.0
        %761 = vmatpush1.xpose.msra.mxu0 0.0
        %762 = vmatprep.subr.mxu0 0.0
        %763 = vmatpush1.xpose.msra.mxu0 0.0
        %764 = vmatprep.subr.mxu0 0.0
        %765 = vmatpush1.xpose.msra.mxu0 0.0
        %766 = vmatprep.subr.mxu0 0.0
        %767 = vmatpush1.xpose.msra.mxu0 0.0
        %768 = vmatprep.subr.mxu0 0.0
        %769 = vmatpush1.xpose.msra.mxu0 0.0
        %770 = vmatprep.subr.mxu0 0.0
        %771 = vmatpush1.xpose.msra.mxu0 0.0
        %772 = vmatprep.subr.mxu0 0.0
        %773 = vmatpush1.xpose.msra.mxu0 0.0
        %774 = vmatprep.subr.mxu0 0.0
        %775 = vmatpush1.xpose.msra.mxu0 0.0
        %776 = vmatprep.subr.mxu0 0.0
        %777 = vmatpush1.xpose.msra.mxu0 0.0
        %778 = vmatprep.subr.mxu0 0.0
        %779 = vmatpush1.xpose.msra.mxu0 0.0
        %780 = vmatprep.subr.mxu0 0.0
        %781 = vmatpush1.xpose.msra.mxu0 0.0
        %782 = vmatprep.subr.mxu0 0.0
        %783 = vmatpush1.xpose.msra.mxu0 0.0
        %784 = vmatprep.subr.mxu0 0.0
        %785 = vmatpush1.xpose.msra.mxu0 0.0
        %786 = vmatprep.subr.mxu0 0.0
        %787 = vmatpush1.xpose.msra.mxu0 0.0
        %788 = vmatprep.subr.mxu0 0.0
        %789 = vmatpush1.xpose.msra.mxu0 0.0
        %790 = vmatprep.subr.mxu0 0.0
        %791 = vmatpush1.xpose.msra.mxu0 0.0
        %792 = vmatprep.subr.mxu0 0.0
        %793 = vmatpush1.xpose.msra.mxu0 0.0
        %794 = vmatprep.subr.mxu0 0.0
        %795 = vmatpush1.xpose.msra.mxu0 0.0
        %796 = vmatprep.mubr.f32.mxu0 0.0
        %797 = vmatmul.mubr.f32.gmra.mrb[0].mxu0 %v728
        %v798 = vpop.f32.mrb[0].mxu0
        %v799 = vadd.f32 0.0, %v798
        %v800 = vpop.f32.mrb[0].mxu0
        %801 = vdwg.mxu0
        %v802 = vsel %vm561, %v799, -inf
        %803 = vmax.xlane.f32.xlu0 %v802
        %v804 = vpop.xlane.xlu0 %803
        %v805 = vsub.f32 %v799, %v804
        %v806 = vmul.f32 %v805, 1.442695
        %v807 = vpow.pop %v806
        %v808 = vsel %vm561, %v807, 0.0
        %809 = vadd.xlane.f32.xlu0 %v808
        %v810 = vpop.xlane.xlu0 %809
        %v811 = vrcp.pop %v810
        %v812 = vmul.f32 %v807, %v811
        %813 = vrot.lane.b32.xlu0 %v554, 56
        %v814 = vpop.permute.xlu0 %813
        %v817 = vsel %vm561, %v812, 0
        %819 = vmatprep.subr.mxu0 0.0
        %820 = vmatpush1.msra.mxu0 %v814
        %821 = vmatprep.subr.mxu0 0.0
        %822 = vmatpush1.msra.mxu0 0.0
        %823 = vmatprep.subr.mxu0 0.0
        %824 = vmatpush1.msra.mxu0 0.0
        %825 = vmatprep.subr.mxu0 0.0
        %826 = vmatpush1.msra.mxu0 0.0
        %827 = vmatprep.subr.mxu0 0.0
        %828 = vmatpush1.msra.mxu0 0.0
        %829 = vmatprep.subr.mxu0 0.0
        %830 = vmatpush1.msra.mxu0 0.0
        %831 = vmatprep.subr.mxu0 0.0
        %832 = vmatpush1.msra.mxu0 0.0
        %833 = vmatprep.subr.mxu0 0.0
        %834 = vmatpush1.msra.mxu0 0.0
        %835 = vmatprep.subr.mxu0 0.0
        %836 = vmatpush1.msra.mxu0 0.0
        %837 = vmatprep.subr.mxu0 0.0
        %838 = vmatpush1.msra.mxu0 0.0
        %839 = vmatprep.subr.mxu0 0.0
        %840 = vmatpush1.msra.mxu0 0.0
        %841 = vmatprep.subr.mxu0 0.0
        %842 = vmatpush1.msra.mxu0 0.0
        %843 = vmatprep.subr.mxu0 0.0
        %844 = vmatpush1.msra.mxu0 0.0
        %845 = vmatprep.subr.mxu0 0.0
        %846 = vmatpush1.msra.mxu0 0.0
        %847 = vmatprep.subr.mxu0 0.0
        %848 = vmatpush1.msra.mxu0 0.0
        %849 = vmatprep.subr.mxu0 0.0
        %850 = vmatpush1.msra.mxu0 0.0
        %851 = vmatprep.subr.mxu0 0.0
        %852 = vmatpush1.msra.mxu0 0.0
        %853 = vmatprep.subr.mxu0 0.0
        %854 = vmatpush1.msra.mxu0 0.0
        %855 = vmatprep.subr.mxu0 0.0
        %856 = vmatpush1.msra.mxu0 0.0
        %857 = vmatprep.subr.mxu0 0.0
        %858 = vmatpush1.msra.mxu0 0.0
        %859 = vmatprep.subr.mxu0 0.0
        %860 = vmatpush1.msra.mxu0 0.0
        %861 = vmatprep.subr.mxu0 0.0
        %862 = vmatpush1.msra.mxu0 0.0
        %863 = vmatprep.subr.mxu0 0.0
        %864 = vmatpush1.msra.mxu0 0.0
        %865 = vmatprep.subr.mxu0 0.0
        %866 = vmatpush1.msra.mxu0 0.0
        %867 = vmatprep.subr.mxu0 0.0
        %868 = vmatpush1.msra.mxu0 0.0
        %869 = vmatprep.subr.mxu0 0.0
        %870 = vmatpush1.msra.mxu0 0.0
        %871 = vmatprep.subr.mxu0 0.0
        %872 = vmatpush1.msra.mxu0 0.0
        %873 = vmatprep.subr.mxu0 0.0
        %874 = vmatpush1.msra.mxu0 0.0
        %875 = vmatprep.subr.mxu0 0.0
        %876 = vmatpush1.msra.mxu0 0.0
        %877 = vmatprep.subr.mxu0 0.0
        %878 = vmatpush1.msra.mxu0 0.0
        %879 = vmatprep.subr.mxu0 0.0
        %880 = vmatpush1.msra.mxu0 0.0
        %881 = vmatprep.subr.mxu0 0.0
        %882 = vmatpush1.msra.mxu0 0.0
        %883 = vmatprep.mubr.f32.mxu0 0.0
        %884 = vmatmul.mubr.f32.gmra.mrb[0].mxu0 %v817
        %v885 = vpop.f32.mrb[0].mxu0
        %v886 = vadd.f32 0.0, %v885
        %v887 = vpop.f32.mrb[0].mxu0
        %888 = vdwg.mxu0
        %889 = vrot.lane.b32.xlu0 %v557, 112
        %v890 = vpop.permute.xlu0 %889
        %891 = vrot.lane.b32.xlu0 %v554, 80
        %v892 = vpop.permute.xlu0 %891
        %v893 = vsel %vm561, %v890, 0
        %v895 = vsel %vm561, %v892, 0
        %897 = vmatprep.subr.mxu0 0.0
        %898 = vmatpush1.xpose.msra.mxu0 %v895
        %899 = vmatprep.subr.mxu0 0.0
        %900 = vmatpush1.xpose.msra.mxu0 0.0
        %901 = vmatprep.subr.mxu0 0.0
        %902 = vmatpush1.xpose.msra.mxu0 0.0
        %903 = vmatprep.subr.mxu0 0.0
        %904 = vmatpush1.xpose.msra.mxu0 0.0
        %905 = vmatprep.subr.mxu0 0.0
        %906 = vmatpush1.xpose.msra.mxu0 0.0
        %907 = vmatprep.subr.mxu0 0.0
        %908 = vmatpush1.xpose.msra.mxu0 0.0
        %909 = vmatprep.subr.mxu0 0.0
        %910 = vmatpush1.xpose.msra.mxu0 0.0
        %911 = vmatprep.subr.mxu0 0.0
        %912 = vmatpush1.xpose.msra.mxu0 0.0
        %913 = vmatprep.subr.mxu0 0.0
        %914 = vmatpush1.xpose.msra.mxu0 0.0
        %915 = vmatprep.subr.mxu0 0.0
        %916 = vmatpush1.xpose.msra.mxu0 0.0
        %917 = vmatprep.subr.mxu0 0.0
        %918 = vmatpush1.xpose.msra.mxu0 0.0
        %919 = vmatprep.subr.mxu0 0.0
        %920 = vmatpush1.xpose.msra.mxu0 0.0
        %921 = vmatprep.subr.mxu0 0.0
        %922 = vmatpush1.xpose.msra.mxu0 0.0
        %923 = vmatprep.subr.mxu0 0.0
        %924 = vmatpush1.xpose.msra.mxu0 0.0
        %925 = vmatprep.subr.mxu0 0.0
        %926 = vmatpush1.xpose.msra.mxu0 0.0
        %927 = vmatprep.subr.mxu0 0.0
        %928 = vmatpush1.xpose.msra.mxu0 0.0
        %929 = vmatprep.subr.mxu0 0.0
        %930 = vmatpush1.xpose.msra.mxu0 0.0
        %931 = vmatprep.subr.mxu0 0.0
        %932 = vmatpush1.xpose.msra.mxu0 0.0
        %933 = vmatprep.subr.mxu0 0.0
        %934 = vmatpush1.xpose.msra.mxu0 0.0
        %935 = vmatprep.subr.mxu0 0.0
        %936 = vmatpush1.xpose.msra.mxu0 0.0
        %937 = vmatprep.subr.mxu0 0.0
        %938 = vmatpush1.xpose.msra.mxu0 0.0
        %939 = vmatprep.subr.mxu0 0.0
        %940 = vmatpush1.xpose.msra.mxu0 0.0
        %941 = vmatprep.subr.mxu0 0.0
        %942 = vmatpush1.xpose.msra.mxu0 0.0
        %943 = vmatprep.subr.mxu0 0.0
        %944 = vmatpush1.xpose.msra.mxu0 0.0
        %945 = vmatprep.subr.mxu0 0.0
        %946 = vmatpush1.xpose.msra.mxu0 0.0
        %947 = vmatprep.subr.mxu0 0.0
        %948 = vmatpush1.xpose.msra.mxu0 0.0
        %949 = vmatprep.subr.mxu0 0.0
        %950 = vmatpush1.xpose.msra.mxu0 0.0
        %951 = vmatprep.subr.mxu0 0.0
        %952 = vmatpush1.xpose.msra.mxu0 0.0
        %953 = vmatprep.subr.mxu0 0.0
        %954 = vmatpush1.xpose.msra.mxu0 0.0
        %955 = vmatprep.subr.mxu0 0.0
        %956 = vmatpush1.xpose.msra.mxu0 0.0
        %957 = vmatprep.subr.mxu0 0.0
        %958 = vmatpush1.xpose.msra.mxu0 0.0
        %959 = vmatprep.subr.mxu0 0.0
        %960 = vmatpush1.xpose.msra.mxu0 0.0
        %961 = vmatprep.mubr.f32.mxu0 0.0
        %962 = vmatmul.mubr.f32.gmra.mrb[0].mxu0 %v893
        %v963 = vpop.f32.mrb[0].mxu0
        %v964 = vadd.f32 0.0, %v963
        %v965 = vpop.f32.mrb[0].mxu0
        %966 = vdwg.mxu0
        %v967 = vsel %vm561, %v964, -inf
        %968 = vmax.xlane.f32.xlu0 %v967
        %v969 = vpop.xlane.xlu0 %968
        %v970 = vsub.f32 %v964, %v969
        %v971 = vmul.f32 %v970, 1.442695
        %v972 = vpow.pop %v971
        %v973 = vsel %vm561, %v972, 0.0
        %974 = vadd.xlane.f32.xlu0 %v973
        %v975 = vpop.xlane.xlu0 %974
        %v976 = vrcp.pop %v975
        %v977 = vmul.f32 %v972, %v976
        %978 = vrot.lane.b32.xlu0 %v554, 48
        %v979 = vpop.permute.xlu0 %978
        %v982 = vsel %vm561, %v977, 0
        %984 = vmatprep.subr.mxu0 0.0
        %985 = vmatpush1.msra.mxu0 %v979
        %986 = vmatprep.subr.mxu0 0.0
        %987 = vmatpush1.msra.mxu0 0.0
        %988 = vmatprep.subr.mxu0 0.0
        %989 = vmatpush1.msra.mxu0 0.0
        %990 = vmatprep.subr.mxu0 0.0
        %991 = vmatpush1.msra.mxu0 0.0
        %992 = vmatprep.subr.mxu0 0.0
        %993 = vmatpush1.msra.mxu0 0.0
        %994 = vmatprep.subr.mxu0 0.0
        %995 = vmatpush1.msra.mxu0 0.0
        %996 = vmatprep.subr.mxu0 0.0
        %997 = vmatpush1.msra.mxu0 0.0
        %998 = vmatprep.subr.mxu0 0.0
        %999 = vmatpush1.msra.mxu0 0.0
        %1000 = vmatprep.subr.mxu0 0.0
        %1001 = vmatpush1.msra.mxu0 0.0
        %1002 = vmatprep.subr.mxu0 0.0
        %1003 = vmatpush1.msra.mxu0 0.0
        %1004 = vmatprep.subr.mxu0 0.0
        %1005 = vmatpush1.msra.mxu0 0.0
        %1006 = vmatprep.subr.mxu0 0.0
        %1007 = vmatpush1.msra.mxu0 0.0
        %1008 = vmatprep.subr.mxu0 0.0
        %1009 = vmatpush1.msra.mxu0 0.0
        %1010 = vmatprep.subr.mxu0 0.0
        %1011 = vmatpush1.msra.mxu0 0.0
        %1012 = vmatprep.subr.mxu0 0.0
        %1013 = vmatpush1.msra.mxu0 0.0
        %1014 = vmatprep.subr.mxu0 0.0
        %1015 = vmatpush1.msra.mxu0 0.0
        %1016 = vmatprep.subr.mxu0 0.0
        %1017 = vmatpush1.msra.mxu0 0.0
        %1018 = vmatprep.subr.mxu0 0.0
        %1019 = vmatpush1.msra.mxu0 0.0
        %1020 = vmatprep.subr.mxu0 0.0
        %1021 = vmatpush1.msra.mxu0 0.0
        %1022 = vmatprep.subr.mxu0 0.0
        %1023 = vmatpush1.msra.mxu0 0.0
        %1024 = vmatprep.subr.mxu0 0.0
        %1025 = vmatpush1.msra.mxu0 0.0
        %1026 = vmatprep.subr.mxu0 0.0
        %1027 = vmatpush1.msra.mxu0 0.0
        %1028 = vmatprep.subr.mxu0 0.0
        %1029 = vmatpush1.msra.mxu0 0.0
        %1030 = vmatprep.subr.mxu0 0.0
        %1031 = vmatpush1.msra.mxu0 0.0
        %1032 = vmatprep.subr.mxu0 0.0
        %1033 = vmatpush1.msra.mxu0 0.0
        %1034 = vmatprep.subr.mxu0 0.0
        %1035 = vmatpush1.msra.mxu0 0.0
        %1036 = vmatprep.subr.mxu0 0.0
        %1037 = vmatpush1.msra.mxu0 0.0
        %1038 = vmatprep.subr.mxu0 0.0
        %1039 = vmatpush1.msra.mxu0 0.0
        %1040 = vmatprep.subr.mxu0 0.0
        %1041 = vmatpush1.msra.mxu0 0.0
        %1042 = vmatprep.subr.mxu0 0.0
        %1043 = vmatpush1.msra.mxu0 0.0
        %1044 = vmatprep.subr.mxu0 0.0
        %1045 = vmatpush1.msra.mxu0 0.0
        %1046 = vmatprep.subr.mxu0 0.0
        %1047 = vmatpush1.msra.mxu0 0.0
        %1048 = vmatprep.mubr.f32.mxu0 0.0
        %1049 = vmatmul.mubr.f32.gmra.mrb[0].mxu0 %v982
        %v1050 = vpop.f32.mrb[0].mxu0
        %v1051 = vadd.f32 0.0, %v1050
        %v1052 = vpop.f32.mrb[0].mxu0
        %1053 = vdwg.mxu0
        %1054 = vrot.lane.b32.xlu0 %v557, 104
        %v1055 = vpop.permute.xlu0 %1054
        %1056 = vrot.lane.b32.xlu0 %v554, 72
        %v1057 = vpop.permute.xlu0 %1056
        %v1058 = vsel %vm561, %v1055, 0
        %v1060 = vsel %vm561, %v1057, 0
        %1062 = vmatprep.subr.mxu0 0.0
        %1063 = vmatpush1.xpose.msra.mxu0 %v1060
        %1064 = vmatprep.subr.mxu0 0.0
        %1065 = vmatpush1.xpose.msra.mxu0 0.0
        %1066 = vmatprep.subr.mxu0 0.0
        %1067 = vmatpush1.xpose.msra.mxu0 0.0
        %1068 = vmatprep.subr.mxu0 0.0
        %1069 = vmatpush1.xpose.msra.mxu0 0.0
        %1070 = vmatprep.subr.mxu0 0.0
        %1071 = vmatpush1.xpose.msra.mxu0 0.0
        %1072 = vmatprep.subr.mxu0 0.0
        %1073 = vmatpush1.xpose.msra.mxu0 0.0
        %1074 = vmatprep.subr.mxu0 0.0
        %1075 = vmatpush1.xpose.msra.mxu0 0.0
        %1076 = vmatprep.subr.mxu0 0.0
        %1077 = vmatpush1.xpose.msra.mxu0 0.0
        %1078 = vmatprep.subr.mxu0 0.0
        %1079 = vmatpush1.xpose.msra.mxu0 0.0
        %1080 = vmatprep.subr.mxu0 0.0
        %1081 = vmatpush1.xpose.msra.mxu0 0.0
        %1082 = vmatprep.subr.mxu0 0.0
        %1083 = vmatpush1.xpose.msra.mxu0 0.0
        %1084 = vmatprep.subr.mxu0 0.0
        %1085 = vmatpush1.xpose.msra.mxu0 0.0
        %1086 = vmatprep.subr.mxu0 0.0
        %1087 = vmatpush1.xpose.msra.mxu0 0.0
        %1088 = vmatprep.subr.mxu0 0.0
        %1089 = vmatpush1.xpose.msra.mxu0 0.0
        %1090 = vmatprep.subr.mxu0 0.0
        %1091 = vmatpush1.xpose.msra.mxu0 0.0
        %1092 = vmatprep.subr.mxu0 0.0
        %1093 = vmatpush1.xpose.msra.mxu0 0.0
        %1094 = vmatprep.subr.mxu0 0.0
        %1095 = vmatpush1.xpose.msra.mxu0 0.0
        %1096 = vmatprep.subr.mxu0 0.0
        %1097 = vmatpush1.xpose.msra.mxu0 0.0
        %1098 = vmatprep.subr.mxu0 0.0
        %1099 = vmatpush1.xpose.msra.mxu0 0.0
        %1100 = vmatprep.subr.mxu0 0.0
        %1101 = vmatpush1.xpose.msra.mxu0 0.0
        %1102 = vmatprep.subr.mxu0 0.0
        %1103 = vmatpush1.xpose.msra.mxu0 0.0
        %1104 = vmatprep.subr.mxu0 0.0
        %1105 = vmatpush1.xpose.msra.mxu0 0.0
        %1106 = vmatprep.subr.mxu0 0.0
        %1107 = vmatpush1.xpose.msra.mxu0 0.0
        %1108 = vmatprep.subr.mxu0 0.0
        %1109 = vmatpush1.xpose.msra.mxu0 0.0
        %1110 = vmatprep.subr.mxu0 0.0
        %1111 = vmatpush1.xpose.msra.mxu0 0.0
        %1112 = vmatprep.subr.mxu0 0.0
        %1113 = vmatpush1.xpose.msra.mxu0 0.0
        %1114 = vmatprep.subr.mxu0 0.0
        %1115 = vmatpush1.xpose.msra.mxu0 0.0
        %1116 = vmatprep.subr.mxu0 0.0
        %1117 = vmatpush1.xpose.msra.mxu0 0.0
        %1118 = vmatprep.subr.mxu0 0.0
        %1119 = vmatpush1.xpose.msra.mxu0 0.0
        %1120 = vmatprep.subr.mxu0 0.0
        %1121 = vmatpush1.xpose.msra.mxu0 0.0
        %1122 = vmatprep.subr.mxu0 0.0
        %1123 = vmatpush1.xpose.msra.mxu0 0.0
        %1124 = vmatprep.subr.mxu0 0.0
        %1125 = vmatpush1.xpose.msra.mxu0 0.0
        %1126 = vmatprep.mubr.f32.mxu0 0.0
        %1127 = vmatmul.mubr.f32.gmra.mrb[0].mxu0 %v1058
        %v1128 = vpop.f32.mrb[0].mxu0
        %v1129 = vadd.f32 0.0, %v1128
        %v1130 = vpop.f32.mrb[0].mxu0
        %1131 = vdwg.mxu0
        %v1132 = vsel %vm561, %v1129, -inf
        %1133 = vmax.xlane.f32.xlu0 %v1132
        %v1134 = vpop.xlane.xlu0 %1133
        %v1135 = vsub.f32 %v1129, %v1134
        %v1136 = vmul.f32 %v1135, 1.442695
        %v1137 = vpow.pop %v1136
        %v1138 = vsel %vm561, %v1137, 0.0
        %1139 = vadd.xlane.f32.xlu0 %v1138
        %v1140 = vpop.xlane.xlu0 %1139
        %v1141 = vrcp.pop %v1140
        %v1142 = vmul.f32 %v1137, %v1141
        %1143 = vrot.lane.b32.xlu0 %v554, 40
        %v1144 = vpop.permute.xlu0 %1143
        %v1147 = vsel %vm561, %v1142, 0
        %1149 = vmatprep.subr.mxu0 0.0
        %1150 = vmatpush1.msra.mxu0 %v1144
        %1151 = vmatprep.subr.mxu0 0.0
        %1152 = vmatpush1.msra.mxu0 0.0
        %1153 = vmatprep.subr.mxu0 0.0
        %1154 = vmatpush1.msra.mxu0 0.0
        %1155 = vmatprep.subr.mxu0 0.0
        %1156 = vmatpush1.msra.mxu0 0.0
        %1157 = vmatprep.subr.mxu0 0.0
        %1158 = vmatpush1.msra.mxu0 0.0
        %1159 = vmatprep.subr.mxu0 0.0
        %1160 = vmatpush1.msra.mxu0 0.0
        %1161 = vmatprep.subr.mxu0 0.0
        %1162 = vmatpush1.msra.mxu0 0.0
        %1163 = vmatprep.subr.mxu0 0.0
        %1164 = vmatpush1.msra.mxu0 0.0
        %1165 = vmatprep.subr.mxu0 0.0
        %1166 = vmatpush1.msra.mxu0 0.0
        %1167 = vmatprep.subr.mxu0 0.0
        %1168 = vmatpush1.msra.mxu0 0.0
        %1169 = vmatprep.subr.mxu0 0.0
        %1170 = vmatpush1.msra.mxu0 0.0
        %1171 = vmatprep.subr.mxu0 0.0
        %1172 = vmatpush1.msra.mxu0 0.0
        %1173 = vmatprep.subr.mxu0 0.0
        %1174 = vmatpush1.msra.mxu0 0.0
        %1175 = vmatprep.subr.mxu0 0.0
        %1176 = vmatpush1.msra.mxu0 0.0
        %1177 = vmatprep.subr.mxu0 0.0
        %1178 = vmatpush1.msra.mxu0 0.0
        %1179 = vmatprep.subr.mxu0 0.0
        %1180 = vmatpush1.msra.mxu0 0.0
        %1181 = vmatprep.subr.mxu0 0.0
        %1182 = vmatpush1.msra.mxu0 0.0
        %1183 = vmatprep.subr.mxu0 0.0
        %1184 = vmatpush1.msra.mxu0 0.0
        %1185 = vmatprep.subr.mxu0 0.0
        %1186 = vmatpush1.msra.mxu0 0.0
        %1187 = vmatprep.subr.mxu0 0.0
        %1188 = vmatpush1.msra.mxu0 0.0
        %1189 = vmatprep.subr.mxu0 0.0
        %1190 = vmatpush1.msra.mxu0 0.0
        %1191 = vmatprep.subr.mxu0 0.0
        %1192 = vmatpush1.msra.mxu0 0.0
        %1193 = vmatprep.subr.mxu0 0.0
        %1194 = vmatpush1.msra.mxu0 0.0
        %1195 = vmatprep.subr.mxu0 0.0
        %1196 = vmatpush1.msra.mxu0 0.0
        %1197 = vmatprep.subr.mxu0 0.0
        %1198 = vmatpush1.msra.mxu0 0.0
        %1199 = vmatprep.subr.mxu0 0.0
        %1200 = vmatpush1.msra.mxu0 0.0
        %1201 = vmatprep.subr.mxu0 0.0
        %1202 = vmatpush1.msra.mxu0 0.0
        %1203 = vmatprep.subr.mxu0 0.0
        %1204 = vmatpush1.msra.mxu0 0.0
        %1205 = vmatprep.subr.mxu0 0.0
        %1206 = vmatpush1.msra.mxu0 0.0
        %1207 = vmatprep.subr.mxu0 0.0
        %1208 = vmatpush1.msra.mxu0 0.0
        %1209 = vmatprep.subr.mxu0 0.0
        %1210 = vmatpush1.msra.mxu0 0.0
        %1211 = vmatprep.subr.mxu0 0.0
        %1212 = vmatpush1.msra.mxu0 0.0
        %1213 = vmatprep.mubr.f32.mxu0 0.0
        %1214 = vmatmul.mubr.f32.gmra.mrb[0].mxu0 %v1147
        %v1215 = vpop.f32.mrb[0].mxu0
        %v1216 = vadd.f32 0.0, %v1215
        %v1217 = vpop.f32.mrb[0].mxu0
        %1218 = vdwg.mxu0
        %1220 = vrot.lane.b32.xlu0 %v886, 8
        %v1221 = vpop.permute.xlu0 %1220
        %1224 = vrot.lane.b32.xlu0 %v1051, 16
        %v1225 = vpop.permute.xlu0 %1224
        %1228 = vrot.lane.b32.xlu0 %v1216, 24
        %v1229 = vpop.permute.xlu0 %1228
        %v1231 = vsel %vm561, %v721, %v1221
        %vm1232 = vcmask 130048
        %v1233 = vsel %vm1232, %v1231, %v1225
        %vm1234 = vcmask 195584
        %v1235 = vsel %vm1234, %v1233, %v1229
        %v1236 = vld [vmem:[%s389] sm:$0xff]
        %v1237 = vld [vmem:[%s389 + $0x8] sm:$0xff]
        %v1238 = vld [vmem:[%s389 + $0x10] sm:$0xff]
        %v1239 = vld [vmem:[%s389 + $0x18] sm:$0xff]
        %v1241 = vsel %vm483, %v1235, 0
        %1243 = vmatprep.subr.mxu0 0.0
        %1244 = vmatpush1.msra.mxu0 %v1236
        %1245 = vmatprep.subr.mxu0 0.0
        %1246 = vmatpush1.msra.mxu0 %v1237
        %1247 = vmatprep.subr.mxu0 0.0
        %1248 = vmatpush1.msra.mxu0 %v1238
        %1249 = vmatprep.subr.mxu0 0.0
        %1250 = vmatpush1.msra.mxu0 %v1239
        %1251 = vmatprep.subr.mxu0 0.0
        %1252 = vmatpush1.msra.mxu0 0.0
        %1253 = vmatprep.subr.mxu0 0.0
        %1254 = vmatpush1.msra.mxu0 0.0
        %1255 = vmatprep.subr.mxu0 0.0
        %1256 = vmatpush1.msra.mxu0 0.0
        %1257 = vmatprep.subr.mxu0 0.0
        %1258 = vmatpush1.msra.mxu0 0.0
        %1259 = vmatprep.subr.mxu0 0.0
        %1260 = vmatpush1.msra.mxu0 0.0
        %1261 = vmatprep.subr.mxu0 0.0
        %1262 = vmatpush1.msra.mxu0 0.0
        %1263 = vmatprep.subr.mxu0 0.0
        %1264 = vmatpush1.msra.mxu0 0.0
        %1265 = vmatprep.subr.mxu0 0.0
        %1266 = vmatpush1.msra.mxu0 0.0
        %1267 = vmatprep.subr.mxu0 0.0
        %1268 = vmatpush1.msra.mxu0 0.0
        %1269 = vmatprep.subr.mxu0 0.0
        %1270 = vmatpush1.msra.mxu0 0.0
        %1271 = vmatprep.subr.mxu0 0.0
        %1272 = vmatpush1.msra.mxu0 0.0
        %1273 = vmatprep.subr.mxu0 0.0
        %1274 = vmatpush1.msra.mxu0 0.0
        %1275 = vmatprep.subr.mxu0 0.0
        %1276 = vmatpush1.msra.mxu0 0.0
        %1277 = vmatprep.subr.mxu0 0.0
        %1278 = vmatpush1.msra.mxu0 0.0
        %1279 = vmatprep.subr.mxu0 0.0
        %1280 = vmatpush1.msra.mxu0 0.0
        %1281 = vmatprep.subr.mxu0 0.0
        %1282 = vmatpush1.msra.mxu0 0.0
        %1283 = vmatprep.subr.mxu0 0.0
        %1284 = vmatpush1.msra.mxu0 0.0
        %1285 = vmatprep.subr.mxu0 0.0
        %1286 = vmatpush1.msra.mxu0 0.0
        %1287 = vmatprep.subr.mxu0 0.0
        %1288 = vmatpush1.msra.mxu0 0.0
        %1289 = vmatprep.subr.mxu0 0.0
        %1290 = vmatpush1.msra.mxu0 0.0
        %1291 = vmatprep.subr.mxu0 0.0
        %1292 = vmatpush1.msra.mxu0 0.0
        %1293 = vmatprep.subr.mxu0 0.0
        %1294 = vmatpush1.msra.mxu0 0.0
        %1295 = vmatprep.subr.mxu0 0.0
        %1296 = vmatpush1.msra.mxu0 0.0
        %1297 = vmatprep.subr.mxu0 0.0
        %1298 = vmatpush1.msra.mxu0 0.0
        %1299 = vmatprep.subr.mxu0 0.0
        %1300 = vmatpush1.msra.mxu0 0.0
        %1301 = vmatprep.subr.mxu0 0.0
        %1302 = vmatpush1.msra.mxu0 0.0
        %1303 = vmatprep.subr.mxu0 0.0
        %1304 = vmatpush1.msra.mxu0 0.0
        %1305 = vmatprep.subr.mxu0 0.0
        %1306 = vmatpush1.msra.mxu0 0.0
        %1307 = vmatprep.mubr.f32.mxu0 0.0
        %1308 = vmatmul.mubr.f32.gmra.mrb[0].mxu0 %v1241
        %v1309 = vpop.f32.mrb[0].mxu0
        %v1310 = vadd.f32 %v477, %v1309
        %v1311 = vpop.f32.mrb[0].mxu0
        %1312 = vdwg.mxu0
        %v1313 = vsel %vm483, %v1310, 0.0
        %1314 = vadd.xlane.f32.xlu0 %v1313
        %v1315 = vpop.xlane.xlu0 %1314
        %v1316 = vrcp.pop 32.0
        %v1317 = vmul.f32 %v1315, %v1316
        %v1318 = vsub.f32 %v1310, %v1317
        %v1319 = vmul.f32 %v1318, %v1318
        %v1320 = vsel %vm483, %v1319, 0.0
        %1321 = vadd.xlane.f32.xlu0 %v1320
        %v1322 = vpop.xlane.xlu0 %1321
        %v1323 = vmul.f32 %v1322, %v1316
        %v1324 = vadd.f32 %v1323, 1e-06
        %v1325 = vrsqrt.pop %v1324
        %v1326 = vmul.f32 %v1318, %v1325
        %v1327 = vlaneseq
        %v1328 = vshrl.u32 %v1327, 7
        %v1329 = vsub.s32 0, %v1328
        %v1330 = vrot.slane %v478, %v1329
        %v1331 = vmul.f32 %v1326, %v1330
        %v1332 = vlaneseq
        %v1333 = vshrl.u32 %v1332, 7
        %v1334 = vsub.s32 1, %v1333
        %v1335 = vrot.slane %v478, %v1334
        %v1336 = vadd.f32 %v1331, %v1335
        %v1337 = vld [vmem:[%s398] sm:$0xff]
        %v1338 = vld [vmem:[%s398 + $0x8] sm:$0xff]
        %v1339 = vld [vmem:[%s398 + $0x10] sm:$0xff]
        %v1340 = vld [vmem:[%s398 + $0x18] sm:$0xff]
        %v1341 = vlaneseq
        %v1342 = vshrl.u32 %v1341, 7
        %v1343 = vsub.s32 2, %v1342
        %v1344 = vrot.slane %v478, %v1343
        %v1346 = vsel %vm483, %v1336, 0
        %1348 = vmatprep.subr.mxu0 0.0
        %1349 = vmatpush1.msra.mxu0 %v1337
        %1350 = vmatprep.subr.mxu0 0.0
        %1351 = vmatpush1.msra.mxu0 %v1338
        %1352 = vmatprep.subr.mxu0 0.0
        %1353 = vmatpush1.msra.mxu0 %v1339
        %1354 = vmatprep.subr.mxu0 0.0
        %1355 = vmatpush1.msra.mxu0 %v1340
        %1356 = vmatprep.subr.mxu0 0.0
        %1357 = vmatpush1.msra.mxu0 0.0
        %1358 = vmatprep.subr.mxu0 0.0
        %1359 = vmatpush1.msra.mxu0 0.0
        %1360 = vmatprep.subr.mxu0 0.0
        %1361 = vmatpush1.msra.mxu0 0.0
        %1362 = vmatprep.subr.mxu0 0.0
        %1363 = vmatpush1.msra.mxu0 0.0
        %1364 = vmatprep.subr.mxu0 0.0
        %1365 = vmatpush1.msra.mxu0 0.0
        %1366 = vmatprep.subr.mxu0 0.0
        %1367 = vmatpush1.msra.mxu0 0.0
        %1368 = vmatprep.subr.mxu0 0.0
        %1369 = vmatpush1.msra.mxu0 0.0
        %1370 = vmatprep.subr.mxu0 0.0
        %1371 = vmatpush1.msra.mxu0 0.0
        %1372 = vmatprep.subr.mxu0 0.0
        %1373 = vmatpush1.msra.mxu0 0.0
        %1374 = vmatprep.subr.mxu0 0.0
        %1375 = vmatpush1.msra.mxu0 0.0
        %1376 = vmatprep.subr.mxu0 0.0
        %1377 = vmatpush1.msra.mxu0 0.0
        %1378 = vmatprep.subr.mxu0 0.0
        %1379 = vmatpush1.msra.mxu0 0.0
        %1380 = vmatprep.subr.mxu0 0.0
        %1381 = vmatpush1.msra.mxu0 0.0
        %1382 = vmatprep.subr.mxu0 0.0
        %1383 = vmatpush1.msra.mxu0 0.0
        %1384 = vmatprep.subr.mxu0 0.0
        %1385 = vmatpush1.msra.mxu0 0.0
        %1386 = vmatprep.subr.mxu0 0.0
        %1387 = vmatpush1.msra.mxu0 0.0
        %1388 = vmatprep.subr.mxu0 0.0
        %1389 = vmatpush1.msra.mxu0 0.0
        %1390 = vmatprep.subr.mxu0 0.0
        %1391 = vmatpush1.msra.mxu0 0.0
        %1392 = vmatprep.subr.mxu0 0.0
        %1393 = vmatpush1.msra.mxu0 0.0
        %1394 = vmatprep.subr.mxu0 0.0
        %1395 = vmatpush1.msra.mxu0 0.0
        %1396 = vmatprep.subr.mxu0 0.0
        %1397 = vmatpush1.msra.mxu0 0.0
        %1398 = vmatprep.subr.mxu0 0.0
        %1399 = vmatpush1.msra.mxu0 0.0
        %1400 = vmatprep.subr.mxu0 0.0
        %1401 = vmatpush1.msra.mxu0 0.0
        %1402 = vmatprep.subr.mxu0 0.0
        %1403 = vmatpush1.msra.mxu0 0.0
        %1404 = vmatprep.subr.mxu0 0.0
        %1405 = vmatpush1.msra.mxu0 0.0
        %1406 = vmatprep.subr.mxu0 0.0
        %1407 = vmatpush1.msra.mxu0 0.0
        %1408 = vmatprep.subr.mxu0 0.0
        %1409 = vmatpush1.msra.mxu0 0.0
        %1410 = vmatprep.subr.mxu0 0.0
        %1411 = vmatpush1.msra.mxu0 0.0
        %1412 = vmatprep.mubr.f32.mxu0 0.0
        %1413 = vmatmul.mubr.f32.gmra.mrb[0].mxu0 %v1346
        %v1414 = vpop.f32.mrb[0].mxu0
        %v1415 = vadd.f32 %v1344, %v1414
        %v1416 = vpop.f32.mrb[0].mxu0
        %1417 = vdwg.mxu0
        %v1418 = vmax.f32 %v1415, 0.0
        %v1419 = vld [vmem:[%s407] sm:$0xff]
        %v1420 = vld [vmem:[%s407 + $0x8] sm:$0xff]
        %v1421 = vld [vmem:[%s407 + $0x10] sm:$0xff]
        %v1422 = vld [vmem:[%s407 + $0x18] sm:$0xff]
        %v1423 = vld [vmem:[%s407 + $0x20] sm:$0xff]
        %v1424 = vld [vmem:[%s407 + $0x28] sm:$0xff]
        %v1425 = vld [vmem:[%s407 + $0x30] sm:$0xff]
        %v1426 = vld [vmem:[%s407 + $0x38] sm:$0xff]
        %v1427 = vlaneseq
        %v1428 = vshrl.u32 %v1427, 7
        %v1429 = vsub.s32 3, %v1428
        %v1430 = vrot.slane %v478, %v1429
        %vm1431 = vcmask 523264
        %v1433 = vsel %vm1431, %v1418, 0
        %1435 = vmatprep.subr.mxu0 0.0
        %1436 = vmatpush1.msra.mxu0 %v1419
        %1437 = vmatprep.subr.mxu0 0.0
        %1438 = vmatpush1.msra.mxu0 %v1420
        %1439 = vmatprep.subr.mxu0 0.0
        %1440 = vmatpush1.msra.mxu0 %v1421
        %1441 = vmatprep.subr.mxu0 0.0
        %1442 = vmatpush1.msra.mxu0 %v1422
        %1443 = vmatprep.subr.mxu0 0.0
        %1444 = vmatpush1.msra.mxu0 %v1423
        %1445 = vmatprep.subr.mxu0 0.0
        %1446 = vmatpush1.msra.mxu0 %v1424
        %1447 = vmatprep.subr.mxu0 0.0
        %1448 = vmatpush1.msra.mxu0 %v1425
        %1449 = vmatprep.subr.mxu0 0.0
        %1450 = vmatpush1.msra.mxu0 %v1426
        %1451 = vmatprep.subr.mxu0 0.0
        %1452 = vmatpush1.msra.mxu0 0.0
        %1453 = vmatprep.subr.mxu0 0.0
        %1454 = vmatpush1.msra.mxu0 0.0
        %1455 = vmatprep.subr.mxu0 0.0
        %1456 = vmatpush1.msra.mxu0 0.0
        %1457 = vmatprep.subr.mxu0 0.0
        %1458 = vmatpush1.msra.mxu0 0.0
        %1459 = vmatprep.subr.mxu0 0.0
        %1460 = vmatpush1.msra.mxu0 0.0
        %1461 = vmatprep.subr.mxu0 0.0
        %1462 = vmatpush1.msra.mxu0 0.0
        %1463 = vmatprep.subr.mxu0 0.0
        %1464 = vmatpush1.msra.mxu0 0.0
        %1465 = vmatprep.subr.mxu0 0.0
        %1466 = vmatpush1.msra.mxu0 0.0
        %1467 = vmatprep.subr.mxu0 0.0
        %1468 = vmatpush1.msra.mxu0 0.0
        %1469 = vmatprep.subr.mxu0 0.0
        %1470 = vmatpush1.msra.mxu0 0.0
        %1471 = vmatprep.subr.mxu0 0.0
        %1472 = vmatpush1.msra.mxu0 0.0
        %1473 = vmatprep.subr.mxu0 0.0
        %1474 = vmatpush1.msra.mxu0 0.0
        %1475 = vmatprep.subr.mxu0 0.0
        %1476 = vmatpush1.msra.mxu0 0.0
        %1477 = vmatprep.subr.mxu0 0.0
        %1478 = vmatpush1.msra.mxu0 0.0
        %1479 = vmatprep.subr.mxu0 0.0
        %1480 = vmatpush1.msra.mxu0 0.0
        %1481 = vmatprep.subr.mxu0 0.0
        %1482 = vmatpush1.msra.mxu0 0.0
        %1483 = vmatprep.subr.mxu0 0.0
        %1484 = vmatpush1.msra.mxu0 0.0
        %1485 = vmatprep.subr.mxu0 0.0
        %1486 = vmatpush1.msra.mxu0 0.0
        %1487 = vmatprep.subr.mxu0 0.0
        %1488 = vmatpush1.msra.mxu0 0.0
        %1489 = vmatprep.subr.mxu0 0.0
        %1490 = vmatpush1.msra.mxu0 0.0
        %1491 = vmatprep.subr.mxu0 0.0
        %1492 = vmatpush1.msra.mxu0 0.0
        %1493 = vmatprep.subr.mxu0 0.0
        %1494 = vmatpush1.msra.mxu0 0.0
        %1495 = vmatprep.subr.mxu0 0.0
        %1496 = vmatpush1.msra.mxu0 0.0
        %1497 = vmatprep.subr.mxu0 0.0
        %1498 = vmatpush1.msra.mxu0 0.0
        %1499 = vmatprep.mubr.f32.mxu0 0.0
        %1500 = vmatmul.mubr.f32.gmra.mrb[0].mxu0 %v1433
        %v1501 = vpop.f32.mrb[0].mxu0
        %v1502 = vadd.f32 %v1430, %v1501
        %v1503 = vpop.f32.mrb[0].mxu0
        %1504 = vdwg.mxu0
        %v1505 = vadd.f32 %v1502, %v1336
        %v1506 = vsel %vm483, %v1505, 0.0
        %1507 = vadd.xlane.f32.xlu0 %v1506
        %v1508 = vpop.xlane.xlu0 %1507
        %v1509 = vmul.f32 %v1508, %v1316
        %v1510 = vsub.f32 %v1505, %v1509
        %v1511 = vmul.f32 %v1510, %v1510
        %v1512 = vsel %vm483, %v1511, 0.0
        %1513 = vadd.xlane.f32.xlu0 %v1512
        %v1514 = vpop.xlane.xlu0 %1513
        %v1515 = vmul.f32 %v1514, %v1316
        %v1516 = vadd.f32 %v1515, 1e-06
        %v1517 = vrsqrt.pop %v1516
        %v1518 = vmul.f32 %v1510, %v1517
        %v1519 = vlaneseq
        %v1520 = vshrl.u32 %v1519, 7
        %v1521 = vsub.s32 4, %v1520
        %v1522 = vrot.slane %v478, %v1521
        %v1523 = vmul.f32 %v1518, %v1522
        %v1524 = vlaneseq
        %v1525 = vshrl.u32 %v1524, 7
        %v1526 = vsub.s32 5, %v1525
        %v1527 = vrot.slane %v478, %v1526
        %v1528 = vadd.f32 %v1523, %v1527
        %1529 = vst.msk [vmem:[%s469] sm:$0xff] %vm483, %v1528
        %s1530 = sand.u32 %s208, 1
        %s1531 = scalar_lea.sflag [#allocation4], %s1530
        %s1532 = sand.u32 %s208, 1
        %s1533 = smul.addr %s1532, 8
        %s1534 = scalar_lea.vmem [#allocation13], %s1533
        // Predicated region
        $region73: #{tpu_custom_call.1} parent=43 // pred_check
          %p1535 = pneg %p218
        $region74: #{tpu_custom_call.1} parent=43 // pred_check_branch
          %1537 = sbr.rel (%p1535) target = $region76
        $region75: #{tpu_custom_call.1} parent=43 // pred_region
          %s1539 = ssub.s32 128, 128
          %1540 = vsyncadd %s1531, %s1539
          %s1541 = smul.addr %s36, 128
          %s1542 = scalar_lea.hbm %s6, %s1541
          %s1544 = sshll.u32 %s1534, 4
          %s1545 = int_to_ptr.vmem [resolvable:$true] %s1544
          %1547 = dma.vmem_to_hbm [thread:$0]  %s1545, 128, %s1542, %s1531
        $region76: #{tpu_custom_call.1} parent=43 // pred_fallthru
          _
      $region44: #{tpu_custom_call.1} parent=5 // pred_fallthru
        _
      %p1548 = scmp.le.s32.totalorder 2, %s27
      // Predicated region
      $region77: #{tpu_custom_call.1} parent=5 // pred_check
        %p1549 = pneg %p1548
      $region78: #{tpu_custom_call.1} parent=5 // pred_check_branch
        %1551 = sbr.rel (%p1549) target = $region80
      $region79: #{tpu_custom_call.1} parent=5 // pred_region
        %s1552 = ssub.s32 %s27, 2
        // Predicated region
        $region81: #{tpu_custom_call.1} parent=79 // pred_check
          %p1553 = pneg %p224
        $region82: #{tpu_custom_call.1} parent=79 // pred_check_branch
          %1555 = sbr.rel (%p1553) target = $region84
        $region83: #{tpu_custom_call.1} parent=79 // pred_region
          %s1556 = sand.u32 %s209, 1
          %s1557 = scalar_lea.sflag [#allocation4], %s1556
          %s1558 = sand.u32 %s209, 1
          %s1559 = smul.addr %s1558, 8
          %s1560 = scalar_lea.vmem [#allocation13], %s1559
          %1561 = dma.done %s1557, 128
        $region84: #{tpu_custom_call.1} parent=79 // pred_fallthru
          _
      $region80: #{tpu_custom_call.1} parent=5 // pred_fallthru
        _
    $region6: #{tpu_custom_call.1} parent=1 // loop_footer
      %s31 = sadd.s32 1, %s27
    $region7: #{tpu_custom_call.1} parent=1 // loop_footer_branch
      %26 = sbr.rel target = $region3
    $region8: #{tpu_custom_call.1} parent=1 // loop_exit
      _
    %1562 = vsyncpa [#allocation3], 1
    %s1563 = scalar_lea.sflag [#allocation3], 1
    %1564 = vsyncpa %s1563, 1
    %1565 = vsyncpa [#allocation6], 1
    %s1566 = scalar_lea.sflag [#allocation6], 1
    %1567 = vsyncpa %s1566, 1
    %1568 = vsyncpa [#allocation9], 1
    %s1569 = scalar_lea.sflag [#allocation9], 1
    %1570 = vsyncpa %s1569, 1
    %1571 = vsyncpa [#allocation12], 1
    %s1572 = scalar_lea.sflag [#allocation12], 1
    %1573 = vsyncpa %s1572, 1
    %1574 = vsyncpa [#allocation4], 1
    %s1575 = scalar_lea.sflag [#allocation4], 1
    %1576 = vsyncpa %s1575, 1

</llo_original>
